<compile_context>
chip_gen: v5e
topology: v5e:2x2
jax: 0.10.0
libtpu: 0.0.40
codegen_flags: <defaults>
</compile_context>

<pallas_src>
import functools

import jax
import jax.numpy as jnp
from jax.experimental import pallas as pl
from jax.experimental.pallas import tpu as pltpu


# ----------------------------------------------------------------------------
# Fused kernel: one grid step == one batch image.
#
# Internal layout: 2-D matrices (channels x flat-padded-spatial).
#   pad1 : (C2+Cup, (H+2)*(W+2)+2)  zero-padded conv1 input (x2 rows | up rows)
#   pad2 : (Cmid,   (H+2)*(W+2)+2)  zero-padded conv2 input
# Conv output is computed over "padded-row" flat coords q = oy*(W+2)+ox (two
# junk columns per row, masked away), so every conv is ONE matmul.
# ----------------------------------------------------------------------------
def _up_fused_kernel(x1_ref, x2_ref, wup_ref, bup_ref, sup_ref,
                     w1_ref, s1_ref, t1_ref, mask_ref,
                     w2_ref, s2_ref, t2_ref,
                     out_ref, pad1_ref, pad2_ref,
                     *, H1, W1, H2, W2, C2, Cup, pad_y0, pad_x0):
    f32 = jnp.float32
    bf16 = jnp.bfloat16
    Wp = W2 + 2
    Q = H2 * Wp                      # flat conv-output length (padded-row coords)

    # scratch persists across grid steps -> re-zero (this also provides the
    # F.pad zeros and the 3x3 conv zero border).
    pad1_ref[...] = jnp.zeros_like(pad1_ref)
    pad2_ref[...] = jnp.zeros_like(pad2_ref)

    # ---- 1) place the skip connection x2 into channel rows [0, C2) ----------
    x2 = x2_ref[0]                                       # (C2, H2*W2)
    for y in range(H2):
        pad1_ref[0:C2, pl.ds((y + 1) * Wp + 1, W2)] = x2[:, y * W2:(y + 1) * W2]

    # ---- 2) ConvTranspose2d(k=2, s=2): one lane-dense bf16 matmul ------------
    # r[(dy*2+dx)*Cup + co, i*W1 + j] = sum_ci W[ci,co,dy,dx] * x1[ci,i,j] + b[co]
    x1 = x1_ref[0].astype(bf16)                          # (Cin, H1*W1)
    r = jnp.dot(wup_ref[...], x1, preferred_element_type=f32) + bup_ref[...]
    # r: (4*Cup, H1*W1), f32

    # ---- 3) fused tap interleave + F.pad into channel rows [C2, C2+Cup) ------
    # selection matrices S[dx][j, 1+pad_x0+2j+dx] = 1 place the (dy,dx) taps at
    # their strided destination lanes via the MXU (no strided stores needed).
    su = sup_ref[...]                                    # (2, W1, Wp), bf16
    su0, su1 = su[0], su[1]
    for dy in range(2):
        a0_blk = r[(dy * 2 + 0) * Cup:(dy * 2 + 1) * Cup, :]
        a1_blk = r[(dy * 2 + 1) * Cup:(dy * 2 + 2) * Cup, :]
        for i in range(H1):
            a0 = a0_blk[:, i * W1:(i + 1) * W1].astype(bf16)
            a1 = a1_blk[:, i * W1:(i + 1) * W1].astype(bf16)
            row = (jnp.dot(a0, su0, preferred_element_type=f32) +
                   jnp.dot(a1, su1, preferred_element_type=f32))   # (Cup, Wp)
            ypad = 1 + pad_y0 + 2 * i + dy
            pad1_ref[C2:C2 + Cup, pl.ds(ypad * Wp, Wp)] = row

    # ---- 4) conv1 3x3 + folded BN + ReLU: single im2col matmul (K = 9*C1) ----
    patches1 = jnp.concatenate(
        [pad1_ref[:, pl.ds(ky * Wp + kx, Q)] for ky in range(3) for kx in range(3)],
        axis=0).astype(bf16)                             # (9*(C2+Cup), Q)
    h = jnp.dot(w1_ref[...], patches1, preferred_element_type=f32)
    h = jnp.maximum(h * s1_ref[...] + t1_ref[...], 0.0)  # (Cmid, Q)

    # ---- 5) re-pad h for conv2: pure lane shift by Wp+1, junk columns masked -
    pad2_ref[:, pl.ds(Wp + 1, Q)] = h * mask_ref[...]

    # ---- 6) conv2 3x3 + folded BN + ReLU: single im2col matmul (K = 9*Cmid) --
    patches2 = jnp.concatenate(
        [pad2_ref[:, pl.ds(ky * Wp + kx, Q)] for ky in range(3) for kx in range(3)],
        axis=0).astype(bf16)                             # (9*Cmid, Q)
    o = jnp.dot(w2_ref[...], patches2, preferred_element_type=f32)
    o = jnp.maximum(o * s2_ref[...] + t2_ref[...], 0.0)  # (Cout, Q)

    # ---- 7) drop the 2 junk columns per row; one lane-dense store ------------
    o_valid = jnp.concatenate(
        [o[:, oy * Wp: oy * Wp + W2] for oy in range(H2)], axis=1)  # (Cout, H2*W2)
    out_ref[0] = o_valid.astype(out_ref.dtype)


# ----------------------------------------------------------------------------
# Parameters (deterministic synthetic init) and the Up forward pass.
# ----------------------------------------------------------------------------
def _bn_fold(gamma, beta, mean, var, eps=1e-5):
    scale = gamma / jnp.sqrt(var + eps)
    shift = beta - mean * scale
    return scale, shift


def init_up_params(key, in_channels, out_channels):
    mid = out_channels                      # DoubleConv default mid_channels
    cup = in_channels // 2
    ks = jax.random.split(key, 16)
    p = {
        "up_w": 0.1 * jax.random.normal(ks[0], (in_channels, cup, 2, 2), jnp.float32),
        "up_b": 0.1 * jax.random.normal(ks[1], (cup,), jnp.float32),
        "c1_w": 0.1 * jax.random.normal(ks[2], (mid, in_channels, 3, 3), jnp.float32),
        "bn1_gamma": 1.0 + 0.1 * jax.random.normal(ks[3], (mid,), jnp.float32),
        "bn1_beta": 0.1 * jax.random.normal(ks[4], (mid,), jnp.float32),
        "bn1_mean": 0.1 * jax.random.normal(ks[5], (mid,), jnp.float32),
        "bn1_var": jnp.abs(jax.random.normal(ks[6], (mid,), jnp.float32)) + 0.5,
        "c2_w": 0.1 * jax.random.normal(ks[7], (out_channels, mid, 3, 3), jnp.float32),
        "bn2_gamma": 1.0 + 0.1 * jax.random.normal(ks[8], (out_channels,), jnp.float32),
        "bn2_beta": 0.1 * jax.random.normal(ks[9], (out_channels,), jnp.float32),
        "bn2_mean": 0.1 * jax.random.normal(ks[10], (out_channels,), jnp.float32),
        "bn2_var": jnp.abs(jax.random.normal(ks[11], (out_channels,), jnp.float32)) + 0.5,
    }
    return p


@jax.jit
def up_forward(params, x1_nchw, x2_nchw):
    N, Cin, H1, W1 = x1_nchw.shape
    _, C2, H2, W2 = x2_nchw.shape
    Cup = params["up_w"].shape[1]
    Cmid = params["c1_w"].shape[0]
    Cout = params["c2_w"].shape[0]
    C1 = C2 + Cup

    diffY, diffX = H2 - 2 * H1, W2 - 2 * W1
    if diffY < 0 or diffX < 0:
        # TODO(synk): negative diffs (crop instead of pad) not implemented.
        raise NotImplementedError("x1 upsampled larger than x2 is not supported")
    pad_y0, pad_x0 = diffY // 2, diffX // 2

    Hp, Wp = H2 + 2, W2 + 2
    Q = H2 * Wp

    # Activations stay NCHW; only cheap contiguous reshapes (no transpose/pad).
    x1f = x1_nchw.reshape(N, Cin, H1 * W1)
    x2f = x2_nchw.reshape(N, C2, H2 * W2)

    # ---- tiny weight / constant prep (bf16 matmul operands, f32 accum) ------
    bf16 = jnp.bfloat16
    w_up = jnp.transpose(params["up_w"], (2, 3, 1, 0)).reshape(4 * Cup, Cin).astype(bf16)
    b_up = jnp.tile(params["up_b"], 4).reshape(4 * Cup, 1).astype(jnp.float32)

    w1_mat = jnp.transpose(params["c1_w"], (0, 2, 3, 1)).reshape(Cmid, 9 * C1).astype(bf16)
    w2_mat = jnp.transpose(params["c2_w"], (0, 2, 3, 1)).reshape(Cout, 9 * Cmid).astype(bf16)

    s1, t1 = _bn_fold(params["bn1_gamma"], params["bn1_beta"],
                      params["bn1_mean"], params["bn1_var"])
    s2, t2 = _bn_fold(params["bn2_gamma"], params["bn2_beta"],
                      params["bn2_mean"], params["bn2_var"])
    s1 = s1.reshape(Cmid, 1)
    t1 = t1.reshape(Cmid, 1)
    s2 = s2.reshape(Cout, 1)
    t2 = t2.reshape(Cout, 1)

    # selection matrices for the fused tap-interleave + F.pad (width axis)
    cols = jnp.arange(Wp)[None, :]
    tgt = 1 + pad_x0 + 2 * jnp.arange(W1)[:, None]
    s_up = jnp.stack([(cols == tgt).astype(bf16),
                      (cols == (tgt + 1)).astype(bf16)], axis=0)      # (2, W1, Wp)

    # validity mask over padded-row flat coords (zeros at the 2 junk cols/row)
    q = jnp.arange(Q)
    mask = ((q % Wp) < W2).astype(jnp.float32).reshape(1, Q)

    kernel = functools.partial(
        _up_fused_kernel, H1=H1, W1=W1, H2=H2, W2=W2,
        C2=C2, Cup=Cup, pad_y0=pad_y0, pad_x0=pad_x0)

    out_flat = pl.pallas_call(
        kernel,
        out_shape=jax.ShapeDtypeStruct((N, Cout, H2 * W2), x1_nchw.dtype),
        grid=(N,),
        in_specs=[
            pl.BlockSpec((1, Cin, H1 * W1), lambda n: (n, 0, 0)),
            pl.BlockSpec((1, C2, H2 * W2), lambda n: (n, 0, 0)),
            pl.BlockSpec((4 * Cup, Cin), lambda n: (0, 0)),
            pl.BlockSpec((4 * Cup, 1), lambda n: (0, 0)),
            pl.BlockSpec((2, W1, Wp), lambda n: (0, 0, 0)),
            pl.BlockSpec((Cmid, 9 * C1), lambda n: (0, 0)),
            pl.BlockSpec((Cmid, 1), lambda n: (0, 0)),
            pl.BlockSpec((Cmid, 1), lambda n: (0, 0)),
            pl.BlockSpec((1, Q), lambda n: (0, 0)),
            pl.BlockSpec((Cout, 9 * Cmid), lambda n: (0, 0)),
            pl.BlockSpec((Cout, 1), lambda n: (0, 0)),
            pl.BlockSpec((Cout, 1), lambda n: (0, 0)),
        ],
        out_specs=pl.BlockSpec((1, Cout, H2 * W2), lambda n: (n, 0, 0)),
        scratch_shapes=[
            pltpu.VMEM((C1, Hp * Wp + 2), jnp.float32),    # padded conv1 input
            pltpu.VMEM((Cmid, Hp * Wp + 2), jnp.float32),  # padded conv2 input
        ],
        compiler_params=pltpu.CompilerParams(dimension_semantics=("parallel",)),
    )(x1f, x2f, w_up, b_up, s_up, w1_mat, s1, t1, mask, w2_mat, s2, t2)

    # free reshape back to NCHW (PyTorch output convention)
    return out_flat.reshape(N, Cout, H2, W2)


if __name__ == "__main__":
    in_channels, out_channels = 8, 4
    N, H, W = 2, 8, 8                      # x1 spatial; x2 is 2x larger (UNet skip)

    key = jax.random.PRNGKey(0)
    kp, k1, k2 = jax.random.split(key, 3)

    params = init_up_params(kp, in_channels, out_channels)
    x1 = jax.random.normal(k1, (N, in_channels, H, W), jnp.float32)               # (2, 8, 8, 8)
    x2 = jax.random.normal(k2, (N, in_channels // 2, 2 * H, 2 * W), jnp.float32)  # (2, 4, 16, 16)

    out = up_forward(params, x1, x2)
    jax.block_until_ready(out)
    assert out.shape == (N, out_channels, 2 * H, 2 * W), out.shape
    print("KERNEL_OK")
</pallas_src>

<mosaic_0001>
module attributes {stable_mosaic.version = 11 : i64} {
  func.func @_up_fused_kernel(%arg0: i32, %arg1: memref<1x8x64xf32, #tpu.memory_space<vmem>>, %arg2: memref<1x4x256xf32, #tpu.memory_space<vmem>>, %arg3: memref<16x8xbf16, #tpu.memory_space<vmem>>, %arg4: memref<16x1xf32, #tpu.memory_space<vmem>>, %arg5: memref<2x8x18xbf16, #tpu.memory_space<vmem>>, %arg6: memref<4x72xbf16, #tpu.memory_space<vmem>>, %arg7: memref<4x1xf32, #tpu.memory_space<vmem>>, %arg8: memref<4x1xf32, #tpu.memory_space<vmem>>, %arg9: memref<1x288xf32, #tpu.memory_space<vmem>>, %arg10: memref<4x36xbf16, #tpu.memory_space<vmem>>, %arg11: memref<4x1xf32, #tpu.memory_space<vmem>>, %arg12: memref<4x1xf32, #tpu.memory_space<vmem>>, %arg13: memref<1x4x256xf32, #tpu.memory_space<vmem>>, %arg14: memref<8x326xf32, #tpu.memory_space<vmem>>, %arg15: memref<4x326xf32, #tpu.memory_space<vmem>>) attributes {dimension_semantics = [#tpu.dimension_semantics<parallel>], iteration_bounds = array<i64: 2>, scalar_prefetch = 0 : i64, scratch_operands = 2 : i64, tpu.core_type = #tpu.core_type<tc>, window_params = [{transform_indices = @transform_0, window_bounds = array<i64: 1, 8, 64>}, {transform_indices = @transform_1, window_bounds = array<i64: 1, 4, 256>}, {pipeline_mode = #tpu.pipeline_mode<synchronous>, transform_indices = @transform_2, window_bounds = array<i64: 16, 8>}, {pipeline_mode = #tpu.pipeline_mode<synchronous>, transform_indices = @transform_3, window_bounds = array<i64: 16, 1>}, {pipeline_mode = #tpu.pipeline_mode<synchronous>, transform_indices = @transform_4, window_bounds = array<i64: 2, 8, 18>}, {pipeline_mode = #tpu.pipeline_mode<synchronous>, transform_indices = @transform_5, window_bounds = array<i64: 4, 72>}, {pipeline_mode = #tpu.pipeline_mode<synchronous>, transform_indices = @transform_6, window_bounds = array<i64: 4, 1>}, {pipeline_mode = #tpu.pipeline_mode<synchronous>, transform_indices = @transform_7, window_bounds = array<i64: 4, 1>}, {pipeline_mode = #tpu.pipeline_mode<synchronous>, transform_indices = @transform_8, window_bounds = array<i64: 1, 288>}, {pipeline_mode = #tpu.pipeline_mode<synchronous>, transform_indices = @transform_9, window_bounds = array<i64: 4, 36>}, {pipeline_mode = #tpu.pipeline_mode<synchronous>, transform_indices = @transform_10, window_bounds = array<i64: 4, 1>}, {pipeline_mode = #tpu.pipeline_mode<synchronous>, transform_indices = @transform_11, window_bounds = array<i64: 4, 1>}, {transform_indices = @transform_12, window_bounds = array<i64: 1, 4, 256>}]} {
    %cst = arith.constant 0.000000e+00 : f32
    %0 = vector.broadcast %cst : f32 to vector<8x326xf32>
    %c0 = arith.constant 0 : index
    %c0_0 = arith.constant 0 : index
    %1 = vector.load %arg14[%c0, %c0_0] : memref<8x326xf32, #tpu.memory_space<vmem>>, vector<8x326xf32>
    tpu.vector_store %arg14[%c0, %c0_0], %0 {strides = array<i32>} : memref<8x326xf32, #tpu.memory_space<vmem>>, vector<8x326xf32>,
    %cst_1 = arith.constant 0.000000e+00 : f32
    %2 = vector.broadcast %cst_1 : f32 to vector<4x326xf32>
    %c0_2 = arith.constant 0 : index
    %c0_3 = arith.constant 0 : index
    %3 = vector.load %arg15[%c0_2, %c0_3] : memref<4x326xf32, #tpu.memory_space<vmem>>, vector<4x326xf32>
    tpu.vector_store %arg15[%c0_2, %c0_3], %2 {strides = array<i32>} : memref<4x326xf32, #tpu.memory_space<vmem>>, vector<4x326xf32>,
    %c0_4 = arith.constant 0 : index
    %c0_5 = arith.constant 0 : index
    %c0_6 = arith.constant 0 : index
    %4 = vector.load %arg2[%c0_4, %c0_5, %c0_6] : memref<1x4x256xf32, #tpu.memory_space<vmem>>, vector<1x4x256xf32>
    %5 = vector.shape_cast %4 : vector<1x4x256xf32> to vector<4x256xf32>
    %6 = vector.extract_strided_slice %5 {offsets = [0, 0], sizes = [4, 16], strides = [1, 1]} : vector<4x256xf32> to vector<4x16xf32>
    %c0_7 = arith.constant 0 : index
    %c19 = arith.constant 19 : index
    %7 = vector.load %arg14[%c0_7, %c19] : memref<8x326xf32, #tpu.memory_space<vmem>>, vector<4x16xf32>
    tpu.vector_store %arg14[%c0_7, %c19], %6 {strides = array<i32>} : memref<8x326xf32, #tpu.memory_space<vmem>>, vector<4x16xf32>,
    %8 = vector.extract_strided_slice %5 {offsets = [0, 16], sizes = [4, 16], strides = [1, 1]} : vector<4x256xf32> to vector<4x16xf32>
    %c0_8 = arith.constant 0 : index
    %c37 = arith.constant 37 : index
    %9 = vector.load %arg14[%c0_8, %c37] : memref<8x326xf32, #tpu.memory_space<vmem>>, vector<4x16xf32>
    tpu.vector_store %arg14[%c0_8, %c37], %8 {strides = array<i32>} : memref<8x326xf32, #tpu.memory_space<vmem>>, vector<4x16xf32>,
    %10 = vector.extract_strided_slice %5 {offsets = [0, 32], sizes = [4, 16], strides = [1, 1]} : vector<4x256xf32> to vector<4x16xf32>
    %c0_9 = arith.constant 0 : index
    %c55 = arith.constant 55 : index
    %11 = vector.load %arg14[%c0_9, %c55] : memref<8x326xf32, #tpu.memory_space<vmem>>, vector<4x16xf32>
    tpu.vector_store %arg14[%c0_9, %c55], %10 {strides = array<i32>} : memref<8x326xf32, #tpu.memory_space<vmem>>, vector<4x16xf32>,
    %12 = vector.extract_strided_slice %5 {offsets = [0, 48], sizes = [4, 16], strides = [1, 1]} : vector<4x256xf32> to vector<4x16xf32>
    %c0_10 = arith.constant 0 : index
    %c73 = arith.constant 73 : index
    %13 = vector.load %arg14[%c0_10, %c73] : memref<8x326xf32, #tpu.memory_space<vmem>>, vector<4x16xf32>
    tpu.vector_store %arg14[%c0_10, %c73], %12 {strides = array<i32>} : memref<8x326xf32, #tpu.memory_space<vmem>>, vector<4x16xf32>,
    %14 = vector.extract_strided_slice %5 {offsets = [0, 64], sizes = [4, 16], strides = [1, 1]} : vector<4x256xf32> to vector<4x16xf32>
    %c0_11 = arith.constant 0 : index
    %c91 = arith.constant 91 : index
    %15 = vector.load %arg14[%c0_11, %c91] : memref<8x326xf32, #tpu.memory_space<vmem>>, vector<4x16xf32>
    tpu.vector_store %arg14[%c0_11, %c91], %14 {strides = array<i32>} : memref<8x326xf32, #tpu.memory_space<vmem>>, vector<4x16xf32>,
    %16 = vector.extract_strided_slice %5 {offsets = [0, 80], sizes = [4, 16], strides = [1, 1]} : vector<4x256xf32> to vector<4x16xf32>
    %c0_12 = arith.constant 0 : index
    %c109 = arith.constant 109 : index
    %17 = vector.load %arg14[%c0_12, %c109] : memref<8x326xf32, #tpu.memory_space<vmem>>, vector<4x16xf32>
    tpu.vector_store %arg14[%c0_12, %c109], %16 {strides = array<i32>} : memref<8x326xf32, #tpu.memory_space<vmem>>, vector<4x16xf32>,
    %18 = vector.extract_strided_slice %5 {offsets = [0, 96], sizes = [4, 16], strides = [1, 1]} : vector<4x256xf32> to vector<4x16xf32>
    %c0_13 = arith.constant 0 : index
    %c127 = arith.constant 127 : index
    %19 = vector.load %arg14[%c0_13, %c127] : memref<8x326xf32, #tpu.memory_space<vmem>>, vector<4x16xf32>
    tpu.vector_store %arg14[%c0_13, %c127], %18 {strides = array<i32>} : memref<8x326xf32, #tpu.memory_space<vmem>>, vector<4x16xf32>,
    %20 = vector.extract_strided_slice %5 {offsets = [0, 112], sizes = [4, 16], strides = [1, 1]} : vector<4x256xf32> to vector<4x16xf32>
    %c0_14 = arith.constant 0 : index
    %c145 = arith.constant 145 : index
    %21 = vector.load %arg14[%c0_14, %c145] : memref<8x326xf32, #tpu.memory_space<vmem>>, vector<4x16xf32>
    tpu.vector_store %arg14[%c0_14, %c145], %20 {strides = array<i32>} : memref<8x326xf32, #tpu.memory_space<vmem>>, vector<4x16xf32>,
    %22 = vector.extract_strided_slice %5 {offsets = [0, 128], sizes = [4, 16], strides = [1, 1]} : vector<4x256xf32> to vector<4x16xf32>
    %c0_15 = arith.constant 0 : index
    %c163 = arith.constant 163 : index
    %23 = vector.load %arg14[%c0_15, %c163] : memref<8x326xf32, #tpu.memory_space<vmem>>, vector<4x16xf32>
    tpu.vector_store %arg14[%c0_15, %c163], %22 {strides = array<i32>} : memref<8x326xf32, #tpu.memory_space<vmem>>, vector<4x16xf32>,
    %24 = vector.extract_strided_slice %5 {offsets = [0, 144], sizes = [4, 16], strides = [1, 1]} : vector<4x256xf32> to vector<4x16xf32>
    %c0_16 = arith.constant 0 : index
    %c181 = arith.constant 181 : index
    %25 = vector.load %arg14[%c0_16, %c181] : memref<8x326xf32, #tpu.memory_space<vmem>>, vector<4x16xf32>
    tpu.vector_store %arg14[%c0_16, %c181], %24 {strides = array<i32>} : memref<8x326xf32, #tpu.memory_space<vmem>>, vector<4x16xf32>,
    %26 = vector.extract_strided_slice %5 {offsets = [0, 160], sizes = [4, 16], strides = [1, 1]} : vector<4x256xf32> to vector<4x16xf32>
    %c0_17 = arith.constant 0 : index
    %c199 = arith.constant 199 : index
    %27 = vector.load %arg14[%c0_17, %c199] : memref<8x326xf32, #tpu.memory_space<vmem>>, vector<4x16xf32>
    tpu.vector_store %arg14[%c0_17, %c199], %26 {strides = array<i32>} : memref<8x326xf32, #tpu.memory_space<vmem>>, vector<4x16xf32>,
    %28 = vector.extract_strided_slice %5 {offsets = [0, 176], sizes = [4, 16], strides = [1, 1]} : vector<4x256xf32> to vector<4x16xf32>
    %c0_18 = arith.constant 0 : index
    %c217 = arith.constant 217 : index
    %29 = vector.load %arg14[%c0_18, %c217] : memref<8x326xf32, #tpu.memory_space<vmem>>, vector<4x16xf32>
    tpu.vector_store %arg14[%c0_18, %c217], %28 {strides = array<i32>} : memref<8x326xf32, #tpu.memory_space<vmem>>, vector<4x16xf32>,
    %30 = vector.extract_strided_slice %5 {offsets = [0, 192], sizes = [4, 16], strides = [1, 1]} : vector<4x256xf32> to vector<4x16xf32>
    %c0_19 = arith.constant 0 : index
    %c235 = arith.constant 235 : index
    %31 = vector.load %arg14[%c0_19, %c235] : memref<8x326xf32, #tpu.memory_space<vmem>>, vector<4x16xf32>
    tpu.vector_store %arg14[%c0_19, %c235], %30 {strides = array<i32>} : memref<8x326xf32, #tpu.memory_space<vmem>>, vector<4x16xf32>,
    %32 = vector.extract_strided_slice %5 {offsets = [0, 208], sizes = [4, 16], strides = [1, 1]} : vector<4x256xf32> to vector<4x16xf32>
    %c0_20 = arith.constant 0 : index
    %c253 = arith.constant 253 : index
    %33 = vector.load %arg14[%c0_20, %c253] : memref<8x326xf32, #tpu.memory_space<vmem>>, vector<4x16xf32>
    tpu.vector_store %arg14[%c0_20, %c253], %32 {strides = array<i32>} : memref<8x326xf32, #tpu.memory_space<vmem>>, vector<4x16xf32>,
    %34 = vector.extract_strided_slice %5 {offsets = [0, 224], sizes = [4, 16], strides = [1, 1]} : vector<4x256xf32> to vector<4x16xf32>
    %c0_21 = arith.constant 0 : index
    %c271 = arith.constant 271 : index
    %35 = vector.load %arg14[%c0_21, %c271] : memref<8x326xf32, #tpu.memory_space<vmem>>, vector<4x16xf32>
    tpu.vector_store %arg14[%c0_21, %c271], %34 {strides = array<i32>} : memref<8x326xf32, #tpu.memory_space<vmem>>, vector<4x16xf32>,
    %36 = vector.extract_strided_slice %5 {offsets = [0, 240], sizes = [4, 16], strides = [1, 1]} : vector<4x256xf32> to vector<4x16xf32>
    %c0_22 = arith.constant 0 : index
    %c289 = arith.constant 289 : index
    %37 = vector.load %arg14[%c0_22, %c289] : memref<8x326xf32, #tpu.memory_space<vmem>>, vector<4x16xf32>
    tpu.vector_store %arg14[%c0_22, %c289], %36 {strides = array<i32>} : memref<8x326xf32, #tpu.memory_space<vmem>>, vector<4x16xf32>,
    %c0_23 = arith.constant 0 : index
    %c0_24 = arith.constant 0 : index
    %c0_25 = arith.constant 0 : index
    %38 = vector.load %arg1[%c0_23, %c0_24, %c0_25] : memref<1x8x64xf32, #tpu.memory_space<vmem>>, vector<1x8x64xf32>
    %39 = vector.shape_cast %38 : vector<1x8x64xf32> to vector<8x64xf32>
    %40 = arith.truncf %39 : vector<8x64xf32> to vector<8x64xbf16>
    %c0_26 = arith.constant 0 : index
    %c0_27 = arith.constant 0 : index
    %41 = vector.load %arg3[%c0_26, %c0_27] : memref<16x8xbf16, #tpu.memory_space<vmem>>, vector<16x8xbf16>
    %cst_28 = arith.constant dense<0.000000e+00> : vector<16x64xf32>
    %42 = tpu.matmul %41, %40, %cst_28 {dimension_numbers = #tpu.dot_dimension_numbers<[1], [0], [0], [1], [0, 0, 1, 1], [], []>} : vector<16x8xbf16>, vector<8x64xbf16>, vector<16x64xf32> -> vector<16x64xf32>
    %c0_29 = arith.constant 0 : index
    %c0_30 = arith.constant 0 : index
    %43 = vector.load %arg4[%c0_29, %c0_30] : memref<16x1xf32, #tpu.memory_space<vmem>>, vector<16x1xf32>
    %44 = vector.broadcast %43 : vector<16x1xf32> to vector<16x64xf32>
    %45 = arith.addf %42, %44 : vector<16x64xf32>
    %c0_31 = arith.constant 0 : index
    %c0_32 = arith.constant 0 : index
    %c0_33 = arith.constant 0 : index
    %46 = vector.load %arg5[%c0_31, %c0_32, %c0_33] : memref<2x8x18xbf16, #tpu.memory_space<vmem>>, vector<2x8x18xbf16>
    %47 = vector.extract_strided_slice %46 {offsets = [0, 0, 0], sizes = [1, 8, 18], strides = [1, 1, 1]} : vector<2x8x18xbf16> to vector<1x8x18xbf16>
    %48 = vector.shape_cast %47 : vector<1x8x18xbf16> to vector<8x18xbf16>
    %49 = vector.extract_strided_slice %46 {offsets = [1, 0, 0], sizes = [1, 8, 18], strides = [1, 1, 1]} : vector<2x8x18xbf16> to vector<1x8x18xbf16>
    %50 = vector.shape_cast %49 : vector<1x8x18xbf16> to vector<8x18xbf16>
    %51 = vector.extract_strided_slice %45 {offsets = [0, 0], sizes = [4, 64], strides = [1, 1]} : vector<16x64xf32> to vector<4x64xf32>
    %52 = vector.extract_strided_slice %45 {offsets = [4, 0], sizes = [4, 64], strides = [1, 1]} : vector<16x64xf32> to vector<4x64xf32>
    %53 = vector.extract_strided_slice %51 {offsets = [0, 0], sizes = [4, 8], strides = [1, 1]} : vector<4x64xf32> to vector<4x8xf32>
    %54 = arith.truncf %53 : vector<4x8xf32> to vector<4x8xbf16>
    %55 = vector.extract_strided_slice %52 {offsets = [0, 0], sizes = [4, 8], strides = [1, 1]} : vector<4x64xf32> to vector<4x8xf32>
    %56 = arith.truncf %55 : vector<4x8xf32> to vector<4x8xbf16>
    %cst_34 = arith.constant dense<0.000000e+00> : vector<4x18xf32>
    %57 = tpu.matmul %54, %48, %cst_34 {dimension_numbers = #tpu.dot_dimension_numbers<[1], [0], [0], [1], [0, 0, 1, 1], [], []>} : vector<4x8xbf16>, vector<8x18xbf16>, vector<4x18xf32> -> vector<4x18xf32>
    %cst_35 = arith.constant dense<0.000000e+00> : vector<4x18xf32>
    %58 = tpu.matmul %56, %50, %cst_35 {dimension_numbers = #tpu.dot_dimension_numbers<[1], [0], [0], [1], [0, 0, 1, 1], [], []>} : vector<4x8xbf16>, vector<8x18xbf16>, vector<4x18xf32> -> vector<4x18xf32>
    %59 = arith.addf %57, %58 : vector<4x18xf32>
    %c4 = arith.constant 4 : index
    %c18 = arith.constant 18 : index
    %60 = vector.load %arg14[%c4, %c18] : memref<8x326xf32, #tpu.memory_space<vmem>>, vector<4x18xf32>
    tpu.vector_store %arg14[%c4, %c18], %59 {strides = array<i32>} : memref<8x326xf32, #tpu.memory_space<vmem>>, vector<4x18xf32>,
    %61 = vector.extract_strided_slice %51 {offsets = [0, 8], sizes = [4, 8], strides = [1, 1]} : vector<4x64xf32> to vector<4x8xf32>
    %62 = arith.truncf %61 : vector<4x8xf32> to vector<4x8xbf16>
    %63 = vector.extract_strided_slice %52 {offsets = [0, 8], sizes = [4, 8], strides = [1, 1]} : vector<4x64xf32> to vector<4x8xf32>
    %64 = arith.truncf %63 : vector<4x8xf32> to vector<4x8xbf16>
    %cst_36 = arith.constant dense<0.000000e+00> : vector<4x18xf32>
    %65 = tpu.matmul %62, %48, %cst_36 {dimension_numbers = #tpu.dot_dimension_numbers<[1], [0], [0], [1], [0, 0, 1, 1], [], []>} : vector<4x8xbf16>, vector<8x18xbf16>, vector<4x18xf32> -> vector<4x18xf32>
    %cst_37 = arith.constant dense<0.000000e+00> : vector<4x18xf32>
    %66 = tpu.matmul %64, %50, %cst_37 {dimension_numbers = #tpu.dot_dimension_numbers<[1], [0], [0], [1], [0, 0, 1, 1], [], []>} : vector<4x8xbf16>, vector<8x18xbf16>, vector<4x18xf32> -> vector<4x18xf32>
    %67 = arith.addf %65, %66 : vector<4x18xf32>
    %c4_38 = arith.constant 4 : index
    %c54 = arith.constant 54 : index
    %68 = vector.load %arg14[%c4_38, %c54] : memref<8x326xf32, #tpu.memory_space<vmem>>, vector<4x18xf32>
    tpu.vector_store %arg14[%c4_38, %c54], %67 {strides = array<i32>} : memref<8x326xf32, #tpu.memory_space<vmem>>, vector<4x18xf32>,
    %69 = vector.extract_strided_slice %51 {offsets = [0, 16], sizes = [4, 8], strides = [1, 1]} : vector<4x64xf32> to vector<4x8xf32>
    %70 = arith.truncf %69 : vector<4x8xf32> to vector<4x8xbf16>
    %71 = vector.extract_strided_slice %52 {offsets = [0, 16], sizes = [4, 8], strides = [1, 1]} : vector<4x64xf32> to vector<4x8xf32>
    %72 = arith.truncf %71 : vector<4x8xf32> to vector<4x8xbf16>
    %cst_39 = arith.constant dense<0.000000e+00> : vector<4x18xf32>
    %73 = tpu.matmul %70, %48, %cst_39 {dimension_numbers = #tpu.dot_dimension_numbers<[1], [0], [0], [1], [0, 0, 1, 1], [], []>} : vector<4x8xbf16>, vector<8x18xbf16>, vector<4x18xf32> -> vector<4x18xf32>
    %cst_40 = arith.constant dense<0.000000e+00> : vector<4x18xf32>
    %74 = tpu.matmul %72, %50, %cst_40 {dimension_numbers = #tpu.dot_dimension_numbers<[1], [0], [0], [1], [0, 0, 1, 1], [], []>} : vector<4x8xbf16>, vector<8x18xbf16>, vector<4x18xf32> -> vector<4x18xf32>
    %75 = arith.addf %73, %74 : vector<4x18xf32>
    %c4_41 = arith.constant 4 : index
    %c90 = arith.constant 90 : index
    %76 = vector.load %arg14[%c4_41, %c90] : memref<8x326xf32, #tpu.memory_space<vmem>>, vector<4x18xf32>
    tpu.vector_store %arg14[%c4_41, %c90], %75 {strides = array<i32>} : memref<8x326xf32, #tpu.memory_space<vmem>>, vector<4x18xf32>,
    %77 = vector.extract_strided_slice %51 {offsets = [0, 24], sizes = [4, 8], strides = [1, 1]} : vector<4x64xf32> to vector<4x8xf32>
    %78 = arith.truncf %77 : vector<4x8xf32> to vector<4x8xbf16>
    %79 = vector.extract_strided_slice %52 {offsets = [0, 24], sizes = [4, 8], strides = [1, 1]} : vector<4x64xf32> to vector<4x8xf32>
    %80 = arith.truncf %79 : vector<4x8xf32> to vector<4x8xbf16>
    %cst_42 = arith.constant dense<0.000000e+00> : vector<4x18xf32>
    %81 = tpu.matmul %78, %48, %cst_42 {dimension_numbers = #tpu.dot_dimension_numbers<[1], [0], [0], [1], [0, 0, 1, 1], [], []>} : vector<4x8xbf16>, vector<8x18xbf16>, vector<4x18xf32> -> vector<4x18xf32>
    %cst_43 = arith.constant dense<0.000000e+00> : vector<4x18xf32>
    %82 = tpu.matmul %80, %50, %cst_43 {dimension_numbers = #tpu.dot_dimension_numbers<[1], [0], [0], [1], [0, 0, 1, 1], [], []>} : vector<4x8xbf16>, vector<8x18xbf16>, vector<4x18xf32> -> vector<4x18xf32>
    %83 = arith.addf %81, %82 : vector<4x18xf32>
    %c4_44 = arith.constant 4 : index
    %c126 = arith.constant 126 : index
    %84 = vector.load %arg14[%c4_44, %c126] : memref<8x326xf32, #tpu.memory_space<vmem>>, vector<4x18xf32>
    tpu.vector_store %arg14[%c4_44, %c126], %83 {strides = array<i32>} : memref<8x326xf32, #tpu.memory_space<vmem>>, vector<4x18xf32>,
    %85 = vector.extract_strided_slice %51 {offsets = [0, 32], sizes = [4, 8], strides = [1, 1]} : vector<4x64xf32> to vector<4x8xf32>
    %86 = arith.truncf %85 : vector<4x8xf32> to vector<4x8xbf16>
    %87 = vector.extract_strided_slice %52 {offsets = [0, 32], sizes = [4, 8], strides = [1, 1]} : vector<4x64xf32> to vector<4x8xf32>
    %88 = arith.truncf %87 : vector<4x8xf32> to vector<4x8xbf16>
    %cst_45 = arith.constant dense<0.000000e+00> : vector<4x18xf32>
    %89 = tpu.matmul %86, %48, %cst_45 {dimension_numbers = #tpu.dot_dimension_numbers<[1], [0], [0], [1], [0, 0, 1, 1], [], []>} : vector<4x8xbf16>, vector<8x18xbf16>, vector<4x18xf32> -> vector<4x18xf32>
    %cst_46 = arith.constant dense<0.000000e+00> : vector<4x18xf32>
    %90 = tpu.matmul %88, %50, %cst_46 {dimension_numbers = #tpu.dot_dimension_numbers<[1], [0], [0], [1], [0, 0, 1, 1], [], []>} : vector<4x8xbf16>, vector<8x18xbf16>, vector<4x18xf32> -> vector<4x18xf32>
    %91 = arith.addf %89, %90 : vector<4x18xf32>
    %c4_47 = arith.constant 4 : index
    %c162 = arith.constant 162 : index
    %92 = vector.load %arg14[%c4_47, %c162] : memref<8x326xf32, #tpu.memory_space<vmem>>, vector<4x18xf32>
    tpu.vector_store %arg14[%c4_47, %c162], %91 {strides = array<i32>} : memref<8x326xf32, #tpu.memory_space<vmem>>, vector<4x18xf32>,
    %93 = vector.extract_strided_slice %51 {offsets = [0, 40], sizes = [4, 8], strides = [1, 1]} : vector<4x64xf32> to vector<4x8xf32>
    %94 = arith.truncf %93 : vector<4x8xf32> to vector<4x8xbf16>
    %95 = vector.extract_strided_slice %52 {offsets = [0, 40], sizes = [4, 8], strides = [1, 1]} : vector<4x64xf32> to vector<4x8xf32>
    %96 = arith.truncf %95 : vector<4x8xf32> to vector<4x8xbf16>
    %cst_48 = arith.constant dense<0.000000e+00> : vector<4x18xf32>
    %97 = tpu.matmul %94, %48, %cst_48 {dimension_numbers = #tpu.dot_dimension_numbers<[1], [0], [0], [1], [0, 0, 1, 1], [], []>} : vector<4x8xbf16>, vector<8x18xbf16>, vector<4x18xf32> -> vector<4x18xf32>
    %cst_49 = arith.constant dense<0.000000e+00> : vector<4x18xf32>
    %98 = tpu.matmul %96, %50, %cst_49 {dimension_numbers = #tpu.dot_dimension_numbers<[1], [0], [0], [1], [0, 0, 1, 1], [], []>} : vector<4x8xbf16>, vector<8x18xbf16>, vector<4x18xf32> -> vector<4x18xf32>
    %99 = arith.addf %97, %98 : vector<4x18xf32>
    %c4_50 = arith.constant 4 : index
    %c198 = arith.constant 198 : index
    %100 = vector.load %arg14[%c4_50, %c198] : memref<8x326xf32, #tpu.memory_space<vmem>>, vector<4x18xf32>
    tpu.vector_store %arg14[%c4_50, %c198], %99 {strides = array<i32>} : memref<8x326xf32, #tpu.memory_space<vmem>>, vector<4x18xf32>,
    %101 = vector.extract_strided_slice %51 {offsets = [0, 48], sizes = [4, 8], strides = [1, 1]} : vector<4x64xf32> to vector<4x8xf32>
    %102 = arith.truncf %101 : vector<4x8xf32> to vector<4x8xbf16>
    %103 = vector.extract_strided_slice %52 {offsets = [0, 48], sizes = [4, 8], strides = [1, 1]} : vector<4x64xf32> to vector<4x8xf32>
    %104 = arith.truncf %103 : vector<4x8xf32> to vector<4x8xbf16>
    %cst_51 = arith.constant dense<0.000000e+00> : vector<4x18xf32>
    %105 = tpu.matmul %102, %48, %cst_51 {dimension_numbers = #tpu.dot_dimension_numbers<[1], [0], [0], [1], [0, 0, 1, 1], [], []>} : vector<4x8xbf16>, vector<8x18xbf16>, vector<4x18xf32> -> vector<4x18xf32>
    %cst_52 = arith.constant dense<0.000000e+00> : vector<4x18xf32>
    %106 = tpu.matmul %104, %50, %cst_52 {dimension_numbers = #tpu.dot_dimension_numbers<[1], [0], [0], [1], [0, 0, 1, 1], [], []>} : vector<4x8xbf16>, vector<8x18xbf16>, vector<4x18xf32> -> vector<4x18xf32>
    %107 = arith.addf %105, %106 : vector<4x18xf32>
    %c4_53 = arith.constant 4 : index
    %c234 = arith.constant 234 : index
    %108 = vector.load %arg14[%c4_53, %c234] : memref<8x326xf32, #tpu.memory_space<vmem>>, vector<4x18xf32>
    tpu.vector_store %arg14[%c4_53, %c234], %107 {strides = array<i32>} : memref<8x326xf32, #tpu.memory_space<vmem>>, vector<4x18xf32>,
    %109 = vector.extract_strided_slice %51 {offsets = [0, 56], sizes = [4, 8], strides = [1, 1]} : vector<4x64xf32> to vector<4x8xf32>
    %110 = arith.truncf %109 : vector<4x8xf32> to vector<4x8xbf16>
    %111 = vector.extract_strided_slice %52 {offsets = [0, 56], sizes = [4, 8], strides = [1, 1]} : vector<4x64xf32> to vector<4x8xf32>
    %112 = arith.truncf %111 : vector<4x8xf32> to vector<4x8xbf16>
    %cst_54 = arith.constant dense<0.000000e+00> : vector<4x18xf32>
    %113 = tpu.matmul %110, %48, %cst_54 {dimension_numbers = #tpu.dot_dimension_numbers<[1], [0], [0], [1], [0, 0, 1, 1], [], []>} : vector<4x8xbf16>, vector<8x18xbf16>, vector<4x18xf32> -> vector<4x18xf32>
    %cst_55 = arith.constant dense<0.000000e+00> : vector<4x18xf32>
    %114 = tpu.matmul %112, %50, %cst_55 {dimension_numbers = #tpu.dot_dimension_numbers<[1], [0], [0], [1], [0, 0, 1, 1], [], []>} : vector<4x8xbf16>, vector<8x18xbf16>, vector<4x18xf32> -> vector<4x18xf32>
    %115 = arith.addf %113, %114 : vector<4x18xf32>
    %c4_56 = arith.constant 4 : index
    %c270 = arith.constant 270 : index
    %116 = vector.load %arg14[%c4_56, %c270] : memref<8x326xf32, #tpu.memory_space<vmem>>, vector<4x18xf32>
    tpu.vector_store %arg14[%c4_56, %c270], %115 {strides = array<i32>} : memref<8x326xf32, #tpu.memory_space<vmem>>, vector<4x18xf32>,
    %117 = vector.extract_strided_slice %45 {offsets = [8, 0], sizes = [4, 64], strides = [1, 1]} : vector<16x64xf32> to vector<4x64xf32>
    %118 = vector.extract_strided_slice %45 {offsets = [12, 0], sizes = [4, 64], strides = [1, 1]} : vector<16x64xf32> to vector<4x64xf32>
    %119 = vector.extract_strided_slice %117 {offsets = [0, 0], sizes = [4, 8], strides = [1, 1]} : vector<4x64xf32> to vector<4x8xf32>
    %120 = arith.truncf %119 : vector<4x8xf32> to vector<4x8xbf16>
    %121 = vector.extract_strided_slice %118 {offsets = [0, 0], sizes = [4, 8], strides = [1, 1]} : vector<4x64xf32> to vector<4x8xf32>
    %122 = arith.truncf %121 : vector<4x8xf32> to vector<4x8xbf16>
    %cst_57 = arith.constant dense<0.000000e+00> : vector<4x18xf32>
    %123 = tpu.matmul %120, %48, %cst_57 {dimension_numbers = #tpu.dot_dimension_numbers<[1], [0], [0], [1], [0, 0, 1, 1], [], []>} : vector<4x8xbf16>, vector<8x18xbf16>, vector<4x18xf32> -> vector<4x18xf32>
    %cst_58 = arith.constant dense<0.000000e+00> : vector<4x18xf32>
    %124 = tpu.matmul %122, %50, %cst_58 {dimension_numbers = #tpu.dot_dimension_numbers<[1], [0], [0], [1], [0, 0, 1, 1], [], []>} : vector<4x8xbf16>, vector<8x18xbf16>, vector<4x18xf32> -> vector<4x18xf32>
    %125 = arith.addf %123, %124 : vector<4x18xf32>
    %c4_59 = arith.constant 4 : index
    %c36 = arith.constant 36 : index
    %126 = vector.load %arg14[%c4_59, %c36] : memref<8x326xf32, #tpu.memory_space<vmem>>, vector<4x18xf32>
    tpu.vector_store %arg14[%c4_59, %c36], %125 {strides = array<i32>} : memref<8x326xf32, #tpu.memory_space<vmem>>, vector<4x18xf32>,
    %127 = vector.extract_strided_slice %117 {offsets = [0, 8], sizes = [4, 8], strides = [1, 1]} : vector<4x64xf32> to vector<4x8xf32>
    %128 = arith.truncf %127 : vector<4x8xf32> to vector<4x8xbf16>
    %129 = vector.extract_strided_slice %118 {offsets = [0, 8], sizes = [4, 8], strides = [1, 1]} : vector<4x64xf32> to vector<4x8xf32>
    %130 = arith.truncf %129 : vector<4x8xf32> to vector<4x8xbf16>
    %cst_60 = arith.constant dense<0.000000e+00> : vector<4x18xf32>
    %131 = tpu.matmul %128, %48, %cst_60 {dimension_numbers = #tpu.dot_dimension_numbers<[1], [0], [0], [1], [0, 0, 1, 1], [], []>} : vector<4x8xbf16>, vector<8x18xbf16>, vector<4x18xf32> -> vector<4x18xf32>
    %cst_61 = arith.constant dense<0.000000e+00> : vector<4x18xf32>
    %132 = tpu.matmul %130, %50, %cst_61 {dimension_numbers = #tpu.dot_dimension_numbers<[1], [0], [0], [1], [0, 0, 1, 1], [], []>} : vector<4x8xbf16>, vector<8x18xbf16>, vector<4x18xf32> -> vector<4x18xf32>
    %133 = arith.addf %131, %132 : vector<4x18xf32>
    %c4_62 = arith.constant 4 : index
    %c72 = arith.constant 72 : index
    %134 = vector.load %arg14[%c4_62, %c72] : memref<8x326xf32, #tpu.memory_space<vmem>>, vector<4x18xf32>
    tpu.vector_store %arg14[%c4_62, %c72], %133 {strides = array<i32>} : memref<8x326xf32, #tpu.memory_space<vmem>>, vector<4x18xf32>,
    %135 = vector.extract_strided_slice %117 {offsets = [0, 16], sizes = [4, 8], strides = [1, 1]} : vector<4x64xf32> to vector<4x8xf32>
    %136 = arith.truncf %135 : vector<4x8xf32> to vector<4x8xbf16>
    %137 = vector.extract_strided_slice %118 {offsets = [0, 16], sizes = [4, 8], strides = [1, 1]} : vector<4x64xf32> to vector<4x8xf32>
    %138 = arith.truncf %137 : vector<4x8xf32> to vector<4x8xbf16>
    %cst_63 = arith.constant dense<0.000000e+00> : vector<4x18xf32>
    %139 = tpu.matmul %136, %48, %cst_63 {dimension_numbers = #tpu.dot_dimension_numbers<[1], [0], [0], [1], [0, 0, 1, 1], [], []>} : vector<4x8xbf16>, vector<8x18xbf16>, vector<4x18xf32> -> vector<4x18xf32>
    %cst_64 = arith.constant dense<0.000000e+00> : vector<4x18xf32>
    %140 = tpu.matmul %138, %50, %cst_64 {dimension_numbers = #tpu.dot_dimension_numbers<[1], [0], [0], [1], [0, 0, 1, 1], [], []>} : vector<4x8xbf16>, vector<8x18xbf16>, vector<4x18xf32> -> vector<4x18xf32>
    %141 = arith.addf %139, %140 : vector<4x18xf32>
    %c4_65 = arith.constant 4 : index
    %c108 = arith.constant 108 : index
    %142 = vector.load %arg14[%c4_65, %c108] : memref<8x326xf32, #tpu.memory_space<vmem>>, vector<4x18xf32>
    tpu.vector_store %arg14[%c4_65, %c108], %141 {strides = array<i32>} : memref<8x326xf32, #tpu.memory_space<vmem>>, vector<4x18xf32>,
    %143 = vector.extract_strided_slice %117 {offsets = [0, 24], sizes = [4, 8], strides = [1, 1]} : vector<4x64xf32> to vector<4x8xf32>
    %144 = arith.truncf %143 : vector<4x8xf32> to vector<4x8xbf16>
    %145 = vector.extract_strided_slice %118 {offsets = [0, 24], sizes = [4, 8], strides = [1, 1]} : vector<4x64xf32> to vector<4x8xf32>
    %146 = arith.truncf %145 : vector<4x8xf32> to vector<4x8xbf16>
    %cst_66 = arith.constant dense<0.000000e+00> : vector<4x18xf32>
    %147 = tpu.matmul %144, %48, %cst_66 {dimension_numbers = #tpu.dot_dimension_numbers<[1], [0], [0], [1], [0, 0, 1, 1], [], []>} : vector<4x8xbf16>, vector<8x18xbf16>, vector<4x18xf32> -> vector<4x18xf32>
    %cst_67 = arith.constant dense<0.000000e+00> : vector<4x18xf32>
    %148 = tpu.matmul %146, %50, %cst_67 {dimension_numbers = #tpu.dot_dimension_numbers<[1], [0], [0], [1], [0, 0, 1, 1], [], []>} : vector<4x8xbf16>, vector<8x18xbf16>, vector<4x18xf32> -> vector<4x18xf32>
    %149 = arith.addf %147, %148 : vector<4x18xf32>
    %c4_68 = arith.constant 4 : index
    %c144 = arith.constant 144 : index
    %150 = vector.load %arg14[%c4_68, %c144] : memref<8x326xf32, #tpu.memory_space<vmem>>, vector<4x18xf32>
    tpu.vector_store %arg14[%c4_68, %c144], %149 {strides = array<i32>} : memref<8x326xf32, #tpu.memory_space<vmem>>, vector<4x18xf32>,
    %151 = vector.extract_strided_slice %117 {offsets = [0, 32], sizes = [4, 8], strides = [1, 1]} : vector<4x64xf32> to vector<4x8xf32>
    %152 = arith.truncf %151 : vector<4x8xf32> to vector<4x8xbf16>
    %153 = vector.extract_strided_slice %118 {offsets = [0, 32], sizes = [4, 8], strides = [1, 1]} : vector<4x64xf32> to vector<4x8xf32>
    %154 = arith.truncf %153 : vector<4x8xf32> to vector<4x8xbf16>
    %cst_69 = arith.constant dense<0.000000e+00> : vector<4x18xf32>
    %155 = tpu.matmul %152, %48, %cst_69 {dimension_numbers = #tpu.dot_dimension_numbers<[1], [0], [0], [1], [0, 0, 1, 1], [], []>} : vector<4x8xbf16>, vector<8x18xbf16>, vector<4x18xf32> -> vector<4x18xf32>
    %cst_70 = arith.constant dense<0.000000e+00> : vector<4x18xf32>
    %156 = tpu.matmul %154, %50, %cst_70 {dimension_numbers = #tpu.dot_dimension_numbers<[1], [0], [0], [1], [0, 0, 1, 1], [], []>} : vector<4x8xbf16>, vector<8x18xbf16>, vector<4x18xf32> -> vector<4x18xf32>
    %157 = arith.addf %155, %156 : vector<4x18xf32>
    %c4_71 = arith.constant 4 : index
    %c180 = arith.constant 180 : index
    %158 = vector.load %arg14[%c4_71, %c180] : memref<8x326xf32, #tpu.memory_space<vmem>>, vector<4x18xf32>
    tpu.vector_store %arg14[%c4_71, %c180], %157 {strides = array<i32>} : memref<8x326xf32, #tpu.memory_space<vmem>>, vector<4x18xf32>,
    %159 = vector.extract_strided_slice %117 {offsets = [0, 40], sizes = [4, 8], strides = [1, 1]} : vector<4x64xf32> to vector<4x8xf32>
    %160 = arith.truncf %159 : vector<4x8xf32> to vector<4x8xbf16>
    %161 = vector.extract_strided_slice %118 {offsets = [0, 40], sizes = [4, 8], strides = [1, 1]} : vector<4x64xf32> to vector<4x8xf32>
    %162 = arith.truncf %161 : vector<4x8xf32> to vector<4x8xbf16>
    %cst_72 = arith.constant dense<0.000000e+00> : vector<4x18xf32>
    %163 = tpu.matmul %160, %48, %cst_72 {dimension_numbers = #tpu.dot_dimension_numbers<[1], [0], [0], [1], [0, 0, 1, 1], [], []>} : vector<4x8xbf16>, vector<8x18xbf16>, vector<4x18xf32> -> vector<4x18xf32>
    %cst_73 = arith.constant dense<0.000000e+00> : vector<4x18xf32>
    %164 = tpu.matmul %162, %50, %cst_73 {dimension_numbers = #tpu.dot_dimension_numbers<[1], [0], [0], [1], [0, 0, 1, 1], [], []>} : vector<4x8xbf16>, vector<8x18xbf16>, vector<4x18xf32> -> vector<4x18xf32>
    %165 = arith.addf %163, %164 : vector<4x18xf32>
    %c4_74 = arith.constant 4 : index
    %c216 = arith.constant 216 : index
    %166 = vector.load %arg14[%c4_74, %c216] : memref<8x326xf32, #tpu.memory_space<vmem>>, vector<4x18xf32>
    tpu.vector_store %arg14[%c4_74, %c216], %165 {strides = array<i32>} : memref<8x326xf32, #tpu.memory_space<vmem>>, vector<4x18xf32>,
    %167 = vector.extract_strided_slice %117 {offsets = [0, 48], sizes = [4, 8], strides = [1, 1]} : vector<4x64xf32> to vector<4x8xf32>
    %168 = arith.truncf %167 : vector<4x8xf32> to vector<4x8xbf16>
    %169 = vector.extract_strided_slice %118 {offsets = [0, 48], sizes = [4, 8], strides = [1, 1]} : vector<4x64xf32> to vector<4x8xf32>
    %170 = arith.truncf %169 : vector<4x8xf32> to vector<4x8xbf16>
    %cst_75 = arith.constant dense<0.000000e+00> : vector<4x18xf32>
    %171 = tpu.matmul %168, %48, %cst_75 {dimension_numbers = #tpu.dot_dimension_numbers<[1], [0], [0], [1], [0, 0, 1, 1], [], []>} : vector<4x8xbf16>, vector<8x18xbf16>, vector<4x18xf32> -> vector<4x18xf32>
    %cst_76 = arith.constant dense<0.000000e+00> : vector<4x18xf32>
    %172 = tpu.matmul %170, %50, %cst_76 {dimension_numbers = #tpu.dot_dimension_numbers<[1], [0], [0], [1], [0, 0, 1, 1], [], []>} : vector<4x8xbf16>, vector<8x18xbf16>, vector<4x18xf32> -> vector<4x18xf32>
    %173 = arith.addf %171, %172 : vector<4x18xf32>
    %c4_77 = arith.constant 4 : index
    %c252 = arith.constant 252 : index
    %174 = vector.load %arg14[%c4_77, %c252] : memref<8x326xf32, #tpu.memory_space<vmem>>, vector<4x18xf32>
    tpu.vector_store %arg14[%c4_77, %c252], %173 {strides = array<i32>} : memref<8x326xf32, #tpu.memory_space<vmem>>, vector<4x18xf32>,
    %175 = vector.extract_strided_slice %117 {offsets = [0, 56], sizes = [4, 8], strides = [1, 1]} : vector<4x64xf32> to vector<4x8xf32>
    %176 = arith.truncf %175 : vector<4x8xf32> to vector<4x8xbf16>
    %177 = vector.extract_strided_slice %118 {offsets = [0, 56], sizes = [4, 8], strides = [1, 1]} : vector<4x64xf32> to vector<4x8xf32>
    %178 = arith.truncf %177 : vector<4x8xf32> to vector<4x8xbf16>
    %cst_78 = arith.constant dense<0.000000e+00> : vector<4x18xf32>
    %179 = tpu.matmul %176, %48, %cst_78 {dimension_numbers = #tpu.dot_dimension_numbers<[1], [0], [0], [1], [0, 0, 1, 1], [], []>} : vector<4x8xbf16>, vector<8x18xbf16>, vector<4x18xf32> -> vector<4x18xf32>
    %cst_79 = arith.constant dense<0.000000e+00> : vector<4x18xf32>
    %180 = tpu.matmul %178, %50, %cst_79 {dimension_numbers = #tpu.dot_dimension_numbers<[1], [0], [0], [1], [0, 0, 1, 1], [], []>} : vector<4x8xbf16>, vector<8x18xbf16>, vector<4x18xf32> -> vector<4x18xf32>
    %181 = arith.addf %179, %180 : vector<4x18xf32>
    %c4_80 = arith.constant 4 : index
    %c288 = arith.constant 288 : index
    %182 = vector.load %arg14[%c4_80, %c288] : memref<8x326xf32, #tpu.memory_space<vmem>>, vector<4x18xf32>
    tpu.vector_store %arg14[%c4_80, %c288], %181 {strides = array<i32>} : memref<8x326xf32, #tpu.memory_space<vmem>>, vector<4x18xf32>,
    %c0_81 = arith.constant 0 : index
    %c0_82 = arith.constant 0 : index
    %183 = vector.load %arg14[%c0_81, %c0_82] : memref<8x326xf32, #tpu.memory_space<vmem>>, vector<8x288xf32>
    %c0_83 = arith.constant 0 : index
    %c1 = arith.constant 1 : index
    %184 = vector.load %arg14[%c0_83, %c1] : memref<8x326xf32, #tpu.memory_space<vmem>>, vector<8x288xf32>
    %c0_84 = arith.constant 0 : index
    %c2 = arith.constant 2 : index
    %185 = vector.load %arg14[%c0_84, %c2] : memref<8x326xf32, #tpu.memory_space<vmem>>, vector<8x288xf32>
    %c0_85 = arith.constant 0 : index
    %c18_86 = arith.constant 18 : index
    %186 = vector.load %arg14[%c0_85, %c18_86] : memref<8x326xf32, #tpu.memory_space<vmem>>, vector<8x288xf32>
    %c0_87 = arith.constant 0 : index
    %c19_88 = arith.constant 19 : index
    %187 = vector.load %arg14[%c0_87, %c19_88] : memref<8x326xf32, #tpu.memory_space<vmem>>, vector<8x288xf32>
    %c0_89 = arith.constant 0 : index
    %c20 = arith.constant 20 : index
    %188 = vector.load %arg14[%c0_89, %c20] : memref<8x326xf32, #tpu.memory_space<vmem>>, vector<8x288xf32>
    %c0_90 = arith.constant 0 : index
    %c36_91 = arith.constant 36 : index
    %189 = vector.load %arg14[%c0_90, %c36_91] : memref<8x326xf32, #tpu.memory_space<vmem>>, vector<8x288xf32>
    %c0_92 = arith.constant 0 : index
    %c37_93 = arith.constant 37 : index
    %190 = vector.load %arg14[%c0_92, %c37_93] : memref<8x326xf32, #tpu.memory_space<vmem>>, vector<8x288xf32>
    %c0_94 = arith.constant 0 : index
    %c38 = arith.constant 38 : index
    %191 = vector.load %arg14[%c0_94, %c38] : memref<8x326xf32, #tpu.memory_space<vmem>>, vector<8x288xf32>
    %192 = tpu.concatenate %183, %184, %185, %186, %187, %188, %189, %190, %191 in 0 : vector<8x288xf32>, vector<8x288xf32>, vector<8x288xf32>, vector<8x288xf32>, vector<8x288xf32>, vector<8x288xf32>, vector<8x288xf32>, vector<8x288xf32>, vector<8x288xf32> -> vector<72x288xf32>
    %193 = arith.truncf %192 : vector<72x288xf32> to vector<72x288xbf16>
    %c0_95 = arith.constant 0 : index
    %c0_96 = arith.constant 0 : index
    %194 = vector.load %arg6[%c0_95, %c0_96] : memref<4x72xbf16, #tpu.memory_space<vmem>>, vector<4x72xbf16>
    %cst_97 = arith.constant dense<0.000000e+00> : vector<4x288xf32>
    %195 = tpu.matmul %194, %193, %cst_97 {dimension_numbers = #tpu.dot_dimension_numbers<[1], [0], [0], [1], [0, 0, 1, 1], [], []>} : vector<4x72xbf16>, vector<72x288xbf16>, vector<4x288xf32> -> vector<4x288xf32>
    %c0_98 = arith.constant 0 : index
    %c0_99 = arith.constant 0 : index
    %196 = vector.load %arg7[%c0_98, %c0_99] : memref<4x1xf32, #tpu.memory_space<vmem>>, vector<4x1xf32>
    %197 = vector.broadcast %196 : vector<4x1xf32> to vector<4x288xf32>
    %198 = arith.mulf %195, %197 : vector<4x288xf32>
    %c0_100 = arith.constant 0 : index
    %c0_101 = arith.constant 0 : index
    %199 = vector.load %arg8[%c0_100, %c0_101] : memref<4x1xf32, #tpu.memory_space<vmem>>, vector<4x1xf32>
    %200 = vector.broadcast %199 : vector<4x1xf32> to vector<4x288xf32>
    %201 = arith.addf %198, %200 : vector<4x288xf32>
    %cst_102 = arith.constant 0.000000e+00 : f32
    %202 = vector.broadcast %cst_102 : f32 to vector<4x288xf32>
    %203 = arith.maximumf %201, %202 : vector<4x288xf32>
    %c0_103 = arith.constant 0 : index
    %c0_104 = arith.constant 0 : index
    %204 = vector.load %arg9[%c0_103, %c0_104] : memref<1x288xf32, #tpu.memory_space<vmem>>, vector<1x288xf32>
    %205 = vector.broadcast %204 : vector<1x288xf32> to vector<4x288xf32>
    %206 = arith.mulf %203, %205 : vector<4x288xf32>
    %c0_105 = arith.constant 0 : index
    %c19_106 = arith.constant 19 : index
    %207 = vector.load %arg15[%c0_105, %c19_106] : memref<4x326xf32, #tpu.memory_space<vmem>>, vector<4x288xf32>
    tpu.vector_store %arg15[%c0_105, %c19_106], %206 {strides = array<i32>} : memref<4x326xf32, #tpu.memory_space<vmem>>, vector<4x288xf32>,
    %c0_107 = arith.constant 0 : index
    %c0_108 = arith.constant 0 : index
    %208 = vector.load %arg15[%c0_107, %c0_108] : memref<4x326xf32, #tpu.memory_space<vmem>>, vector<4x288xf32>
    %c0_109 = arith.constant 0 : index
    %c1_110 = arith.constant 1 : index
    %209 = vector.load %arg15[%c0_109, %c1_110] : memref<4x326xf32, #tpu.memory_space<vmem>>, vector<4x288xf32>
    %c0_111 = arith.constant 0 : index
    %c2_112 = arith.constant 2 : index
    %210 = vector.load %arg15[%c0_111, %c2_112] : memref<4x326xf32, #tpu.memory_space<vmem>>, vector<4x288xf32>
    %c0_113 = arith.constant 0 : index
    %c18_114 = arith.constant 18 : index
    %211 = vector.load %arg15[%c0_113, %c18_114] : memref<4x326xf32, #tpu.memory_space<vmem>>, vector<4x288xf32>
    %c0_115 = arith.constant 0 : index
    %c19_116 = arith.constant 19 : index
    %212 = vector.load %arg15[%c0_115, %c19_116] : memref<4x326xf32, #tpu.memory_space<vmem>>, vector<4x288xf32>
    %c0_117 = arith.constant 0 : index
    %c20_118 = arith.constant 20 : index
    %213 = vector.load %arg15[%c0_117, %c20_118] : memref<4x326xf32, #tpu.memory_space<vmem>>, vector<4x288xf32>
    %c0_119 = arith.constant 0 : index
    %c36_120 = arith.constant 36 : index
    %214 = vector.load %arg15[%c0_119, %c36_120] : memref<4x326xf32, #tpu.memory_space<vmem>>, vector<4x288xf32>
    %c0_121 = arith.constant 0 : index
    %c37_122 = arith.constant 37 : index
    %215 = vector.load %arg15[%c0_121, %c37_122] : memref<4x326xf32, #tpu.memory_space<vmem>>, vector<4x288xf32>
    %c0_123 = arith.constant 0 : index
    %c38_124 = arith.constant 38 : index
    %216 = vector.load %arg15[%c0_123, %c38_124] : memref<4x326xf32, #tpu.memory_space<vmem>>, vector<4x288xf32>
    %217 = tpu.concatenate %208, %209, %210, %211, %212, %213, %214, %215, %216 in 0 : vector<4x288xf32>, vector<4x288xf32>, vector<4x288xf32>, vector<4x288xf32>, vector<4x288xf32>, vector<4x288xf32>, vector<4x288xf32>, vector<4x288xf32>, vector<4x288xf32> -> vector<36x288xf32>
    %218 = arith.truncf %217 : vector<36x288xf32> to vector<36x288xbf16>
    %c0_125 = arith.constant 0 : index
    %c0_126 = arith.constant 0 : index
    %219 = vector.load %arg10[%c0_125, %c0_126] : memref<4x36xbf16, #tpu.memory_space<vmem>>, vector<4x36xbf16>
    %cst_127 = arith.constant dense<0.000000e+00> : vector<4x288xf32>
    %220 = tpu.matmul %219, %218, %cst_127 {dimension_numbers = #tpu.dot_dimension_numbers<[1], [0], [0], [1], [0, 0, 1, 1], [], []>} : vector<4x36xbf16>, vector<36x288xbf16>, vector<4x288xf32> -> vector<4x288xf32>
    %c0_128 = arith.constant 0 : index
    %c0_129 = arith.constant 0 : index
    %221 = vector.load %arg11[%c0_128, %c0_129] : memref<4x1xf32, #tpu.memory_space<vmem>>, vector<4x1xf32>
    %222 = vector.broadcast %221 : vector<4x1xf32> to vector<4x288xf32>
    %223 = arith.mulf %220, %222 : vector<4x288xf32>
    %c0_130 = arith.constant 0 : index
    %c0_131 = arith.constant 0 : index
    %224 = vector.load %arg12[%c0_130, %c0_131] : memref<4x1xf32, #tpu.memory_space<vmem>>, vector<4x1xf32>
    %225 = vector.broadcast %224 : vector<4x1xf32> to vector<4x288xf32>
    %226 = arith.addf %223, %225 : vector<4x288xf32>
    %cst_132 = arith.constant 0.000000e+00 : f32
    %227 = vector.broadcast %cst_132 : f32 to vector<4x288xf32>
    %228 = arith.maximumf %226, %227 : vector<4x288xf32>
    %229 = vector.extract_strided_slice %228 {offsets = [0, 0], sizes = [4, 16], strides = [1, 1]} : vector<4x288xf32> to vector<4x16xf32>
    %230 = vector.extract_strided_slice %228 {offsets = [0, 18], sizes = [4, 16], strides = [1, 1]} : vector<4x288xf32> to vector<4x16xf32>
    %231 = vector.extract_strided_slice %228 {offsets = [0, 36], sizes = [4, 16], strides = [1, 1]} : vector<4x288xf32> to vector<4x16xf32>
    %232 = vector.extract_strided_slice %228 {offsets = [0, 54], sizes = [4, 16], strides = [1, 1]} : vector<4x288xf32> to vector<4x16xf32>
    %233 = vector.extract_strided_slice %228 {offsets = [0, 72], sizes = [4, 16], strides = [1, 1]} : vector<4x288xf32> to vector<4x16xf32>
    %234 = vector.extract_strided_slice %228 {offsets = [0, 90], sizes = [4, 16], strides = [1, 1]} : vector<4x288xf32> to vector<4x16xf32>
    %235 = vector.extract_strided_slice %228 {offsets = [0, 108], sizes = [4, 16], strides = [1, 1]} : vector<4x288xf32> to vector<4x16xf32>
    %236 = vector.extract_strided_slice %228 {offsets = [0, 126], sizes = [4, 16], strides = [1, 1]} : vector<4x288xf32> to vector<4x16xf32>
    %237 = vector.extract_strided_slice %228 {offsets = [0, 144], sizes = [4, 16], strides = [1, 1]} : vector<4x288xf32> to vector<4x16xf32>
    %238 = vector.extract_strided_slice %228 {offsets = [0, 162], sizes = [4, 16], strides = [1, 1]} : vector<4x288xf32> to vector<4x16xf32>
    %239 = vector.extract_strided_slice %228 {offsets = [0, 180], sizes = [4, 16], strides = [1, 1]} : vector<4x288xf32> to vector<4x16xf32>
    %240 = vector.extract_strided_slice %228 {offsets = [0, 198], sizes = [4, 16], strides = [1, 1]} : vector<4x288xf32> to vector<4x16xf32>
    %241 = vector.extract_strided_slice %228 {offsets = [0, 216], sizes = [4, 16], strides = [1, 1]} : vector<4x288xf32> to vector<4x16xf32>
    %242 = vector.extract_strided_slice %228 {offsets = [0, 234], sizes = [4, 16], strides = [1, 1]} : vector<4x288xf32> to vector<4x16xf32>
    %243 = vector.extract_strided_slice %228 {offsets = [0, 252], sizes = [4, 16], strides = [1, 1]} : vector<4x288xf32> to vector<4x16xf32>
    %244 = vector.extract_strided_slice %228 {offsets = [0, 270], sizes = [4, 16], strides = [1, 1]} : vector<4x288xf32> to vector<4x16xf32>
    %245 = tpu.concatenate %229, %230, %231, %232, %233, %234, %235, %236, %237, %238, %239, %240, %241, %242, %243, %244 in 1 : vector<4x16xf32>, vector<4x16xf32>, vector<4x16xf32>, vector<4x16xf32>, vector<4x16xf32>, vector<4x16xf32>, vector<4x16xf32>, vector<4x16xf32>, vector<4x16xf32>, vector<4x16xf32>, vector<4x16xf32>, vector<4x16xf32>, vector<4x16xf32>, vector<4x16xf32>, vector<4x16xf32>, vector<4x16xf32> -> vector<4x256xf32>
    %c0_133 = arith.constant 0 : index
    %c0_134 = arith.constant 0 : index
    %c0_135 = arith.constant 0 : index
    %246 = vector.load %arg13[%c0_133, %c0_134, %c0_135] : memref<1x4x256xf32, #tpu.memory_space<vmem>>, vector<1x4x256xf32>
    %247 = vector.shape_cast %246 : vector<1x4x256xf32> to vector<4x256xf32>
    %248 = vector.shape_cast %245 : vector<4x256xf32> to vector<1x4x256xf32>
    tpu.vector_store %arg13[%c0_133, %c0_134, %c0_135], %248 {strides = array<i32>} : memref<1x4x256xf32, #tpu.memory_space<vmem>>, vector<1x4x256xf32>,
    return
  }
  func.func @transform_0(%arg0: i32) -> (i32, i32, i32) {
    %c0_i32 = arith.constant 0 : i32
    %c0_i32_0 = arith.constant 0 : i32
    %c0_i32_1 = arith.constant 0 : i32
    return %arg0, %c0_i32, %c0_i32_0 : i32, i32, i32
  }
  func.func @transform_1(%arg0: i32) -> (i32, i32, i32) {
    %c0_i32 = arith.constant 0 : i32
    %c0_i32_0 = arith.constant 0 : i32
    %c0_i32_1 = arith.constant 0 : i32
    return %arg0, %c0_i32, %c0_i32_0 : i32, i32, i32
  }
  func.func @transform_2(%arg0: i32) -> (i32, i32) {
    %c0_i32 = arith.constant 0 : i32
    %c0_i32_0 = arith.constant 0 : i32
    %c0_i32_1 = arith.constant 0 : i32
    return %c0_i32, %c0_i32_0 : i32, i32
  }
  func.func @transform_3(%arg0: i32) -> (i32, i32) {
    %c0_i32 = arith.constant 0 : i32
    %c0_i32_0 = arith.constant 0 : i32
    %c0_i32_1 = arith.constant 0 : i32
    return %c0_i32, %c0_i32_0 : i32, i32
  }
  func.func @transform_4(%arg0: i32) -> (i32, i32, i32) {
    %c0_i32 = arith.constant 0 : i32
    %c0_i32_0 = arith.constant 0 : i32
    %c0_i32_1 = arith.constant 0 : i32
    %c0_i32_2 = arith.constant 0 : i32
    return %c0_i32, %c0_i32_0, %c0_i32_1 : i32, i32, i32
  }
  func.func @transform_5(%arg0: i32) -> (i32, i32) {
    %c0_i32 = arith.constant 0 : i32
    %c0_i32_0 = arith.constant 0 : i32
    %c0_i32_1 = arith.constant 0 : i32
    return %c0_i32, %c0_i32_0 : i32, i32
  }
  func.func @transform_6(%arg0: i32) -> (i32, i32) {
    %c0_i32 = arith.constant 0 : i32
    %c0_i32_0 = arith.constant 0 : i32
    %c0_i32_1 = arith.constant 0 : i32
    return %c0_i32, %c0_i32_0 : i32, i32
  }
  func.func @transform_7(%arg0: i32) -> (i32, i32) {
    %c0_i32 = arith.constant 0 : i32
    %c0_i32_0 = arith.constant 0 : i32
    %c0_i32_1 = arith.constant 0 : i32
    return %c0_i32, %c0_i32_0 : i32, i32
  }
  func.func @transform_8(%arg0: i32) -> (i32, i32) {
    %c0_i32 = arith.constant 0 : i32
    %c0_i32_0 = arith.constant 0 : i32
    %c0_i32_1 = arith.constant 0 : i32
    return %c0_i32, %c0_i32_0 : i32, i32
  }
  func.func @transform_9(%arg0: i32) -> (i32, i32) {
    %c0_i32 = arith.constant 0 : i32
    %c0_i32_0 = arith.constant 0 : i32
    %c0_i32_1 = arith.constant 0 : i32
    return %c0_i32, %c0_i32_0 : i32, i32
  }
  func.func @transform_10(%arg0: i32) -> (i32, i32) {
    %c0_i32 = arith.constant 0 : i32
    %c0_i32_0 = arith.constant 0 : i32
    %c0_i32_1 = arith.constant 0 : i32
    return %c0_i32, %c0_i32_0 : i32, i32
  }
  func.func @transform_11(%arg0: i32) -> (i32, i32) {
    %c0_i32 = arith.constant 0 : i32
    %c0_i32_0 = arith.constant 0 : i32
    %c0_i32_1 = arith.constant 0 : i32
    return %c0_i32, %c0_i32_0 : i32, i32
  }
  func.func @transform_12(%arg0: i32) -> (i32, i32, i32) {
    %c0_i32 = arith.constant 0 : i32
    %c0_i32_0 = arith.constant 0 : i32
    %c0_i32_1 = arith.constant 0 : i32
    return %arg0, %c0_i32, %c0_i32_0 : i32, i32, i32
  }
}

</mosaic_0001>

<llo_original>
// kernel: tile.8
$region0: #{tile.8}
  #allocation2 [shape = 's32[1]{0}', space=sflag, size = 0x4, scoped, tag = 'scoped memory for tile.8']
  %s0 = inlined_call_operand.hbm [shape: f32[4], index: 0, kind: input, shape index: {}]
  %s1 = inlined_call_operand.vmem [shape: f32[4,4], index: 1, kind: output, shape index: {}]
  $region1: #{tile.8} parent=0
    #allocation0 [shape = 'u8[512]{0}', space=vmem, size = 0x400, scoped, tag = 'operand span for operand 0']
    #allocation1 [shape = 's32[1]{0}', space=sflag, size = 0x4, scoped, tag = 'scoped memory for tile.8']
    %2 = vsyncpa [#allocation1], 0
    // Predicated region
    $region2: #{tile.8} parent=1 // pred_check
      _
    $region3: #{tile.8} parent=1 // pred_check_branch
      %4 = sbr.rel (0) target = $region5
    $region4: #{tile.8} parent=1 // pred_region
      %6 = vsyncadd [#allocation1], 0
      %s8 = sshll.u32 %s0, 4
      %s9 = int_to_ptr.hbm [resolvable:$true] %s8
      %s10 = sshll.u32 [#allocation0], 4
      %s11 = int_to_ptr.vmem [resolvable:$true] %s10
      %13 = dma.hbm_to_vmem [thread:$0]  %s9, 16, %s11, [#allocation1]
    $region5: #{tile.8} parent=1 // pred_fallthru
      _
    // Predicated region
    $region6: #{tile.8} parent=1 // pred_check
      _
    $region7: #{tile.8} parent=1 // pred_check_branch
      %15 = sbr.rel (0) target = $region9
    $region8: #{tile.8} parent=1 // pred_region
      %17 = dma.done [#allocation1], 16
    $region9: #{tile.8} parent=1 // pred_fallthru
      _
    %v18 = vld [vmem:[#allocation0] ss:$0 sm:$0xff]
    %19 = vst [vmem:[%s1] sm:$0xf] %v18
    %20 = vsyncpa [#allocation1], 1

// kernel: tile.0
$region0: #{tile.0}
  %s0 = inlined_call_operand.vmem [shape: f32[4,4], index: 0, kind: input, shape index: {}]
  %s1 = inlined_call_operand.vmem [shape: f32[16,1], index: 1, kind: output, shape index: {}]
  $region1: #{tile.0} parent=0
    #allocation0 [shape = 'u8[4096]{0}', space=vmem, size = 0x1000, scoped, tag = 'scoped mem for input reshape']
    %s3 = ssub.s32 16, 1
    %v4 = vld [vmem:[%s0] sm:%s3]
    %5 = vst [vmem:[#allocation0] sm:%s3] %v4
    %v6 = vld [vmem:[#allocation0] sm:$0xf]
    %vm7 = vcmask 7168
    %8 = vst.msk [vmem:[%s1] ss:$4 sm:$0xf] %vm7, %v6
    %v9 = vld [vmem:[#allocation0] sm:$0xf]
    %10 = vrot.lane.b32.xlu0 %v9, 127
    %v11 = vpop.permute.xlu0 %10
    %vm12 = vcmask 7168
    %s13 = scalar_lea.vmem %s1, 1
    %14 = vst.msk [vmem:[%s13] ss:$4 sm:$0xf] %vm12, %v11
    %v15 = vld [vmem:[#allocation0] sm:$0xf]
    %16 = vrot.lane.b32.xlu0 %v15, 126
    %v17 = vpop.permute.xlu0 %16
    %vm18 = vcmask 7168
    %s19 = scalar_lea.vmem %s1, 2
    %20 = vst.msk [vmem:[%s19] ss:$4 sm:$0xf] %vm18, %v17
    %v21 = vld [vmem:[#allocation0] sm:$0xf]
    %22 = vrot.lane.b32.xlu0 %v21, 125
    %v23 = vpop.permute.xlu0 %22
    %vm24 = vcmask 7168
    %s25 = scalar_lea.vmem %s1, 3
    %26 = vst.msk [vmem:[%s25] ss:$4 sm:$0xf] %vm24, %v23

// kernel: up_forward.1
$region0: #{up_forward.1}
  #allocation0 [shape = 'u32[]', space=smem, size = 0x4, offset = 0x4, fixed_abs, tag = 'smem constant byte address 0x4 - core index']
  #allocation1 [shape = 'u32[72,128]{1,0:T(1,128)}', space=vmem, size = 0x9000, scoped, tag = 'internal scratch']
  #allocation2 [shape = 'f32[8,326]{1,0:T(8,128)}', space=vmem, size = 0x3000, scoped, tag = 'scratch operand']
  #allocation3 [shape = 'f32[4,326]{1,0:T(4,128)}', space=vmem, size = 0x1800, scoped, tag = 'scratch operand']
  %s0 = inlined_call_operand.vmem [shape: f32[2,8,64], index: 0, kind: input, shape index: {}]
  %s1 = inlined_call_operand.vmem [shape: f32[2,4,256], index: 1, kind: input, shape index: {}]
  %s2 = inlined_call_operand.vmem [shape: bf16[16,8], index: 2, kind: input, shape index: {}]
  %s3 = inlined_call_operand.vmem [shape: f32[16,1], index: 3, kind: input, shape index: {}]
  %s4 = inlined_call_operand.vmem [shape: bf16[2,8,18], index: 4, kind: input, shape index: {}]
  %s5 = inlined_call_operand.vmem [shape: bf16[4,72], index: 5, kind: input, shape index: {}]
  %s6 = inlined_call_operand.vmem [shape: f32[4,1], index: 6, kind: input, shape index: {}]
  %s7 = inlined_call_operand.vmem [shape: f32[4,1], index: 7, kind: input, shape index: {}]
  %s8 = inlined_call_operand.vmem [shape: f32[1,288], index: 8, kind: input, shape index: {}]
  %s9 = inlined_call_operand.vmem [shape: bf16[4,36], index: 9, kind: input, shape index: {}]
  %s10 = inlined_call_operand.vmem [shape: f32[4,1], index: 10, kind: input, shape index: {}]
  %s11 = inlined_call_operand.vmem [shape: f32[4,1], index: 11, kind: input, shape index: {}]
  %s12 = inlined_call_operand.vmem [shape: f32[2,4,256], index: 12, kind: output, shape index: {}]
  %s13 = sld [smem:[#allocation0]]
  $region81: #{up_forward.1} parent=0
    _
  %s15 = ssub.s32 1, %s13
  %s16 = scalar_select 0, %s15, %s13
  loop: start=0, step=1, limit=4
  $region2: #{up_forward.1} parent=0 // loop_pre_header
    _
  $region3: #{up_forward.1} parent=0 // loop_header
    %s18 = sphi 0, %s22
    %p19 = scmp.ge.s32.totalorder %s18, 4
    %s28 = sphi 0, %s30
    %s31 = sphi 0, %s28
    %s32 = sphi 0, %s31
    %s48 = sphi 0, %s32
    %s54 = sphi 0, %s56
    %s57 = sphi 0, %s54
    %s58 = sphi 0, %s57
    %s74 = sphi 0, %s58
    %s78 = sphi 0, %s78
    %s80 = sphi 0, %s78
    %s81 = sphi 0, %s80
    %s95 = sphi 0, %s81
    %s99 = sphi 0, %s99
    %s101 = sphi 0, %s99
    %s102 = sphi 0, %s101
    %s116 = sphi 0, %s102
    %s120 = sphi 0, %s120
    %s122 = sphi 0, %s120
    %s123 = sphi 0, %s122
    %s137 = sphi 0, %s123
    %s141 = sphi 0, %s141
    %s143 = sphi 0, %s141
    %s144 = sphi 0, %s143
    %s158 = sphi 0, %s144
    %s162 = sphi 0, %s162
    %s164 = sphi 0, %s162
    %s165 = sphi 0, %s164
    %s179 = sphi 0, %s165
    %s183 = sphi 0, %s183
    %s185 = sphi 0, %s183
    %s186 = sphi 0, %s185
    %s200 = sphi 0, %s186
    %s204 = sphi 0, %s204
    %s206 = sphi 0, %s204
    %s207 = sphi 0, %s206
    %s221 = sphi 0, %s207
    %s225 = sphi 0, %s225
    %s227 = sphi 0, %s225
    %s228 = sphi 0, %s227
    %s242 = sphi 0, %s228
    %s246 = sphi 0, %s246
    %s248 = sphi 0, %s246
    %s249 = sphi 0, %s248
    %s263 = sphi 0, %s249
    %s267 = sphi 0, %s267
    %s269 = sphi 0, %s267
    %s270 = sphi 0, %s269
    %s284 = sphi 0, %s270
    %s290 = sphi 0, %s292
    %s293 = sphi 0, %s290
    %s294 = sphi 0, %s293
    %s310 = sphi 0, %s294
  $region4: #{up_forward.1} parent=0 // loop_header_branch
    %21 = sbr.rel (%p19) target = $region8
  $region5: #{up_forward.1} parent=0 // loop_body
    %s23 = ssub.s32 %s18, 1
    %s24 = ssub.s32 %s18, 2
    %s25 = sadd.s32 %s18, 1
    %s26 = ssub.s32 %s18, %s25
    %p27 = scmp.eq.s32.totalorder %s26, 0
    %s29 = sadd.s32 %s28, 1
    %s30 = scalar_select %p27, %s28, %s29
    %p33 = pneg %p27
    %p34 = scmp.eq.s32.totalorder %s18, 1
    %p35 = por %p33, %p34
    %p36 = scmp.ne.s32.totalorder %s28, %s31
    %p37 = scmp.eq.s32.totalorder %s18, 0
    %p38 = por %p36, %p37
    %p39 = scmp.ne.s32.totalorder %s28, %s31
    %p40 = scmp.eq.s32.totalorder %s23, 1
    %p41 = por %p39, %p40
    %p42 = scmp.ne.s32.totalorder %s31, %s32
    %p43 = scmp.eq.s32.totalorder %s23, 0
    %p44 = por %p42, %p43
    %p45 = scmp.ne.s32.totalorder %s31, %s32
    %p46 = scmp.eq.s32.totalorder %s24, 1
    %p47 = por %p45, %p46
    %p49 = scmp.ne.s32.totalorder %s32, %s48
    %p50 = scmp.eq.s32.totalorder %s24, 0
    %p51 = por %p49, %p50
    %s52 = ssub.s32 %s18, %s25
    %p53 = scmp.eq.s32.totalorder %s52, 0
    %s55 = sadd.s32 %s54, 1
    %s56 = scalar_select %p53, %s54, %s55
    %p59 = pneg %p53
    %p60 = scmp.eq.s32.totalorder %s18, 1
    %p61 = por %p59, %p60
    %p62 = scmp.ne.s32.totalorder %s54, %s57
    %p63 = scmp.eq.s32.totalorder %s18, 0
    %p64 = por %p62, %p63
    %p65 = scmp.ne.s32.totalorder %s54, %s57
    %p66 = scmp.eq.s32.totalorder %s23, 1
    %p67 = por %p65, %p66
    %p68 = scmp.ne.s32.totalorder %s57, %s58
    %p69 = scmp.eq.s32.totalorder %s23, 0
    %p70 = por %p68, %p69
    %p71 = scmp.ne.s32.totalorder %s57, %s58
    %p72 = scmp.eq.s32.totalorder %s24, 1
    %p73 = por %p71, %p72
    %p75 = scmp.ne.s32.totalorder %s58, %s74
    %p76 = scmp.eq.s32.totalorder %s24, 0
    %p77 = por %p75, %p76
    %s79 = sadd.s32 %s78, 1
    %p82 = scmp.eq.s32.totalorder %s18, 1
    %p83 = scmp.ne.s32.totalorder %s78, %s80
    %p84 = scmp.eq.s32.totalorder %s18, 0
    %p85 = por %p83, %p84
    %p86 = scmp.ne.s32.totalorder %s78, %s80
    %p87 = scmp.eq.s32.totalorder %s23, 1
    %p88 = por %p86, %p87
    %p89 = scmp.ne.s32.totalorder %s80, %s81
    %p90 = scmp.eq.s32.totalorder %s23, 0
    %p91 = por %p89, %p90
    %p92 = scmp.ne.s32.totalorder %s80, %s81
    %p93 = scmp.eq.s32.totalorder %s24, 1
    %p94 = por %p92, %p93
    %p96 = scmp.ne.s32.totalorder %s81, %s95
    %p97 = scmp.eq.s32.totalorder %s24, 0
    %p98 = por %p96, %p97
    %s100 = sadd.s32 %s99, 1
    %p103 = scmp.eq.s32.totalorder %s18, 1
    %p104 = scmp.ne.s32.totalorder %s99, %s101
    %p105 = scmp.eq.s32.totalorder %s18, 0
    %p106 = por %p104, %p105
    %p107 = scmp.ne.s32.totalorder %s99, %s101
    %p108 = scmp.eq.s32.totalorder %s23, 1
    %p109 = por %p107, %p108
    %p110 = scmp.ne.s32.totalorder %s101, %s102
    %p111 = scmp.eq.s32.totalorder %s23, 0
    %p112 = por %p110, %p111
    %p113 = scmp.ne.s32.totalorder %s101, %s102
    %p114 = scmp.eq.s32.totalorder %s24, 1
    %p115 = por %p113, %p114
    %p117 = scmp.ne.s32.totalorder %s102, %s116
    %p118 = scmp.eq.s32.totalorder %s24, 0
    %p119 = por %p117, %p118
    %s121 = sadd.s32 %s120, 1
    %p124 = scmp.eq.s32.totalorder %s18, 1
    %p125 = scmp.ne.s32.totalorder %s120, %s122
    %p126 = scmp.eq.s32.totalorder %s18, 0
    %p127 = por %p125, %p126
    %p128 = scmp.ne.s32.totalorder %s120, %s122
    %p129 = scmp.eq.s32.totalorder %s23, 1
    %p130 = por %p128, %p129
    %p131 = scmp.ne.s32.totalorder %s122, %s123
    %p132 = scmp.eq.s32.totalorder %s23, 0
    %p133 = por %p131, %p132
    %p134 = scmp.ne.s32.totalorder %s122, %s123
    %p135 = scmp.eq.s32.totalorder %s24, 1
    %p136 = por %p134, %p135
    %p138 = scmp.ne.s32.totalorder %s123, %s137
    %p139 = scmp.eq.s32.totalorder %s24, 0
    %p140 = por %p138, %p139
    %s142 = sadd.s32 %s141, 1
    %p145 = scmp.eq.s32.totalorder %s18, 1
    %p146 = scmp.ne.s32.totalorder %s141, %s143
    %p147 = scmp.eq.s32.totalorder %s18, 0
    %p148 = por %p146, %p147
    %p149 = scmp.ne.s32.totalorder %s141, %s143
    %p150 = scmp.eq.s32.totalorder %s23, 1
    %p151 = por %p149, %p150
    %p152 = scmp.ne.s32.totalorder %s143, %s144
    %p153 = scmp.eq.s32.totalorder %s23, 0
    %p154 = por %p152, %p153
    %p155 = scmp.ne.s32.totalorder %s143, %s144
    %p156 = scmp.eq.s32.totalorder %s24, 1
    %p157 = por %p155, %p156
    %p159 = scmp.ne.s32.totalorder %s144, %s158
    %p160 = scmp.eq.s32.totalorder %s24, 0
    %p161 = por %p159, %p160
    %s163 = sadd.s32 %s162, 1
    %p166 = scmp.eq.s32.totalorder %s18, 1
    %p167 = scmp.ne.s32.totalorder %s162, %s164
    %p168 = scmp.eq.s32.totalorder %s18, 0
    %p169 = por %p167, %p168
    %p170 = scmp.ne.s32.totalorder %s162, %s164
    %p171 = scmp.eq.s32.totalorder %s23, 1
    %p172 = por %p170, %p171
    %p173 = scmp.ne.s32.totalorder %s164, %s165
    %p174 = scmp.eq.s32.totalorder %s23, 0
    %p175 = por %p173, %p174
    %p176 = scmp.ne.s32.totalorder %s164, %s165
    %p177 = scmp.eq.s32.totalorder %s24, 1
    %p178 = por %p176, %p177
    %p180 = scmp.ne.s32.totalorder %s165, %s179
    %p181 = scmp.eq.s32.totalorder %s24, 0
    %p182 = por %p180, %p181
    %s184 = sadd.s32 %s183, 1
    %p187 = scmp.eq.s32.totalorder %s18, 1
    %p188 = scmp.ne.s32.totalorder %s183, %s185
    %p189 = scmp.eq.s32.totalorder %s18, 0
    %p190 = por %p188, %p189
    %p191 = scmp.ne.s32.totalorder %s183, %s185
    %p192 = scmp.eq.s32.totalorder %s23, 1
    %p193 = por %p191, %p192
    %p194 = scmp.ne.s32.totalorder %s185, %s186
    %p195 = scmp.eq.s32.totalorder %s23, 0
    %p196 = por %p194, %p195
    %p197 = scmp.ne.s32.totalorder %s185, %s186
    %p198 = scmp.eq.s32.totalorder %s24, 1
    %p199 = por %p197, %p198
    %p201 = scmp.ne.s32.totalorder %s186, %s200
    %p202 = scmp.eq.s32.totalorder %s24, 0
    %p203 = por %p201, %p202
    %s205 = sadd.s32 %s204, 1
    %p208 = scmp.eq.s32.totalorder %s18, 1
    %p209 = scmp.ne.s32.totalorder %s204, %s206
    %p210 = scmp.eq.s32.totalorder %s18, 0
    %p211 = por %p209, %p210
    %p212 = scmp.ne.s32.totalorder %s204, %s206
    %p213 = scmp.eq.s32.totalorder %s23, 1
    %p214 = por %p212, %p213
    %p215 = scmp.ne.s32.totalorder %s206, %s207
    %p216 = scmp.eq.s32.totalorder %s23, 0
    %p217 = por %p215, %p216
    %p218 = scmp.ne.s32.totalorder %s206, %s207
    %p219 = scmp.eq.s32.totalorder %s24, 1
    %p220 = por %p218, %p219
    %p222 = scmp.ne.s32.totalorder %s207, %s221
    %p223 = scmp.eq.s32.totalorder %s24, 0
    %p224 = por %p222, %p223
    %s226 = sadd.s32 %s225, 1
    %p229 = scmp.eq.s32.totalorder %s18, 1
    %p230 = scmp.ne.s32.totalorder %s225, %s227
    %p231 = scmp.eq.s32.totalorder %s18, 0
    %p232 = por %p230, %p231
    %p233 = scmp.ne.s32.totalorder %s225, %s227
    %p234 = scmp.eq.s32.totalorder %s23, 1
    %p235 = por %p233, %p234
    %p236 = scmp.ne.s32.totalorder %s227, %s228
    %p237 = scmp.eq.s32.totalorder %s23, 0
    %p238 = por %p236, %p237
    %p239 = scmp.ne.s32.totalorder %s227, %s228
    %p240 = scmp.eq.s32.totalorder %s24, 1
    %p241 = por %p239, %p240
    %p243 = scmp.ne.s32.totalorder %s228, %s242
    %p244 = scmp.eq.s32.totalorder %s24, 0
    %p245 = por %p243, %p244
    %s247 = sadd.s32 %s246, 1
    %p250 = scmp.eq.s32.totalorder %s18, 1
    %p251 = scmp.ne.s32.totalorder %s246, %s248
    %p252 = scmp.eq.s32.totalorder %s18, 0
    %p253 = por %p251, %p252
    %p254 = scmp.ne.s32.totalorder %s246, %s248
    %p255 = scmp.eq.s32.totalorder %s23, 1
    %p256 = por %p254, %p255
    %p257 = scmp.ne.s32.totalorder %s248, %s249
    %p258 = scmp.eq.s32.totalorder %s23, 0
    %p259 = por %p257, %p258
    %p260 = scmp.ne.s32.totalorder %s248, %s249
    %p261 = scmp.eq.s32.totalorder %s24, 1
    %p262 = por %p260, %p261
    %p264 = scmp.ne.s32.totalorder %s249, %s263
    %p265 = scmp.eq.s32.totalorder %s24, 0
    %p266 = por %p264, %p265
    %s268 = sadd.s32 %s267, 1
    %p271 = scmp.eq.s32.totalorder %s18, 1
    %p272 = scmp.ne.s32.totalorder %s267, %s269
    %p273 = scmp.eq.s32.totalorder %s18, 0
    %p274 = por %p272, %p273
    %p275 = scmp.ne.s32.totalorder %s267, %s269
    %p276 = scmp.eq.s32.totalorder %s23, 1
    %p277 = por %p275, %p276
    %p278 = scmp.ne.s32.totalorder %s269, %s270
    %p279 = scmp.eq.s32.totalorder %s23, 0
    %p280 = por %p278, %p279
    %p281 = scmp.ne.s32.totalorder %s269, %s270
    %p282 = scmp.eq.s32.totalorder %s24, 1
    %p283 = por %p281, %p282
    %p285 = scmp.ne.s32.totalorder %s270, %s284
    %p286 = scmp.eq.s32.totalorder %s24, 0
    %p287 = por %p285, %p286
    %s288 = ssub.s32 %s18, %s25
    %p289 = scmp.eq.s32.totalorder %s288, 0
    %s291 = sadd.s32 %s290, 1
    %s292 = scalar_select %p289, %s290, %s291
    %p295 = pneg %p289
    %p296 = scmp.eq.s32.totalorder %s18, 1
    %p297 = por %p295, %p296
    %p298 = scmp.ne.s32.totalorder %s290, %s293
    %p299 = scmp.eq.s32.totalorder %s18, 0
    %p300 = por %p298, %p299
    %p301 = scmp.ne.s32.totalorder %s290, %s293
    %p302 = scmp.eq.s32.totalorder %s23, 1
    %p303 = por %p301, %p302
    %p304 = scmp.ne.s32.totalorder %s293, %s294
    %p305 = scmp.eq.s32.totalorder %s23, 0
    %p306 = por %p304, %p305
    %p307 = scmp.ne.s32.totalorder %s293, %s294
    %p308 = scmp.eq.s32.totalorder %s24, 1
    %p309 = por %p307, %p308
    %p311 = scmp.ne.s32.totalorder %s294, %s310
    %p312 = scmp.eq.s32.totalorder %s24, 0
    %p313 = por %p311, %p312
    %p314 = scmp.le.s32.totalorder 1, %s18
    %p315 = scmp.lt.s32.totalorder %s18, 3
    %p316 = pnand %p314, %p315
    %p317 = pneg %p316
    // Predicated region
    $region9: #{up_forward.1} parent=5 // pred_check
      _
    $region10: #{up_forward.1} parent=5 // pred_check_branch
      %319 = sbr.rel (%p316) target = $region12
    $region11: #{up_forward.1} parent=5 // pred_region
      %s320 = ssub.s32 %s18, 1
      // Predicated region
      $region13: #{up_forward.1} parent=11 // pred_check
        %p321 = pneg %p91
      $region14: #{up_forward.1} parent=11 // pred_check_branch
        %323 = sbr.rel (%p321) target = $region16
      $region15: #{up_forward.1} parent=11 // pred_region
        _
      $region16: #{up_forward.1} parent=11 // pred_fallthru
        _
      // Predicated region
      $region17: #{up_forward.1} parent=11 // pred_check
        %p324 = pneg %p112
      $region18: #{up_forward.1} parent=11 // pred_check_branch
        %326 = sbr.rel (%p324) target = $region20
      $region19: #{up_forward.1} parent=11 // pred_region
        _
      $region20: #{up_forward.1} parent=11 // pred_fallthru
        _
      // Predicated region
      $region21: #{up_forward.1} parent=11 // pred_check
        %p327 = pneg %p133
      $region22: #{up_forward.1} parent=11 // pred_check_branch
        %329 = sbr.rel (%p327) target = $region24
      $region23: #{up_forward.1} parent=11 // pred_region
        _
      $region24: #{up_forward.1} parent=11 // pred_fallthru
        _
      // Predicated region
      $region25: #{up_forward.1} parent=11 // pred_check
        %p330 = pneg %p154
      $region26: #{up_forward.1} parent=11 // pred_check_branch
        %332 = sbr.rel (%p330) target = $region28
      $region27: #{up_forward.1} parent=11 // pred_region
        _
      $region28: #{up_forward.1} parent=11 // pred_fallthru
        _
      // Predicated region
      $region29: #{up_forward.1} parent=11 // pred_check
        %p333 = pneg %p175
      $region30: #{up_forward.1} parent=11 // pred_check_branch
        %335 = sbr.rel (%p333) target = $region32
      $region31: #{up_forward.1} parent=11 // pred_region
        _
      $region32: #{up_forward.1} parent=11 // pred_fallthru
        _
      // Predicated region
      $region33: #{up_forward.1} parent=11 // pred_check
        %p336 = pneg %p196
      $region34: #{up_forward.1} parent=11 // pred_check_branch
        %338 = sbr.rel (%p336) target = $region36
      $region35: #{up_forward.1} parent=11 // pred_region
        _
      $region36: #{up_forward.1} parent=11 // pred_fallthru
        _
      // Predicated region
      $region37: #{up_forward.1} parent=11 // pred_check
        %p339 = pneg %p217
      $region38: #{up_forward.1} parent=11 // pred_check_branch
        %341 = sbr.rel (%p339) target = $region40
      $region39: #{up_forward.1} parent=11 // pred_region
        _
      $region40: #{up_forward.1} parent=11 // pred_fallthru
        _
      // Predicated region
      $region41: #{up_forward.1} parent=11 // pred_check
        %p342 = pneg %p238
      $region42: #{up_forward.1} parent=11 // pred_check_branch
        %344 = sbr.rel (%p342) target = $region44
      $region43: #{up_forward.1} parent=11 // pred_region
        _
      $region44: #{up_forward.1} parent=11 // pred_fallthru
        _
      // Predicated region
      $region45: #{up_forward.1} parent=11 // pred_check
        %p345 = pneg %p259
      $region46: #{up_forward.1} parent=11 // pred_check_branch
        %347 = sbr.rel (%p345) target = $region48
      $region47: #{up_forward.1} parent=11 // pred_region
        _
      $region48: #{up_forward.1} parent=11 // pred_fallthru
        _
      // Predicated region
      $region49: #{up_forward.1} parent=11 // pred_check
        %p348 = pneg %p280
      $region50: #{up_forward.1} parent=11 // pred_check_branch
        %350 = sbr.rel (%p348) target = $region52
      $region51: #{up_forward.1} parent=11 // pred_region
        _
      $region52: #{up_forward.1} parent=11 // pred_fallthru
        _
    $region12: #{up_forward.1} parent=5 // pred_fallthru
      _
    %p351 = scmp.lt.s32.totalorder %s18, 2
    // Predicated region
    $region53: #{up_forward.1} parent=5 // pred_check
      %p352 = pneg %p351
    $region54: #{up_forward.1} parent=5 // pred_check_branch
      %354 = sbr.rel (%p352) target = $region56
    $region55: #{up_forward.1} parent=5 // pred_region
      // Predicated region
      $region57: #{up_forward.1} parent=55 // pred_check
        %p355 = pneg %p38
      $region58: #{up_forward.1} parent=55 // pred_check_branch
        %357 = sbr.rel (%p355) target = $region60
      $region59: #{up_forward.1} parent=55 // pred_region
        %p358 = scmp.lt.s32.totalorder %s18, 1
        %s359 = scalar_select %p358, %s18, 1
        %s360 = smul.addr %s359, 8
        %s361 = scalar_lea.vmem %s0, %s360
      $region60: #{up_forward.1} parent=55 // pred_fallthru
        _
      // Predicated region
      $region61: #{up_forward.1} parent=55 // pred_check
        %p362 = pneg %p64
      $region62: #{up_forward.1} parent=55 // pred_check_branch
        %364 = sbr.rel (%p362) target = $region64
      $region63: #{up_forward.1} parent=55 // pred_region
        %p365 = scmp.lt.s32.totalorder %s18, 1
        %s366 = scalar_select %p365, %s18, 1
        %s367 = smul.addr %s366, 2
        %s368 = smul.addr %s367, 4
        %s369 = scalar_lea.vmem %s1, %s368
      $region64: #{up_forward.1} parent=55 // pred_fallthru
        _
    $region56: #{up_forward.1} parent=5 // pred_fallthru
      _
    %p370 = scmp.le.s32.totalorder 1, %s18
    %p371 = scmp.lt.s32.totalorder %s18, 3
    %p372 = pnand %p370, %p371
    %p373 = pneg %p372
    // Predicated region
    $region65: #{up_forward.1} parent=5 // pred_check
      _
    $region66: #{up_forward.1} parent=5 // pred_check_branch
      %375 = sbr.rel (%p372) target = $region68
    $region67: #{up_forward.1} parent=5 // pred_region
      %s376 = ssub.s32 %s18, 1
      %p377 = scmp.lt.s32.totalorder %s23, 1
      %s378 = scalar_select %p377, %s23, 1
      %s379 = smul.addr %s378, 8
      %s380 = scalar_lea.vmem %s0, %s379
      %p381 = pneg %p44
      %p382 = pneg %p41
      %p383 = scmp.lt.s32.totalorder %s23, 1
      %s384 = scalar_select %p383, %s23, 1
      %s385 = smul.addr %s384, 2
      %s386 = smul.addr %s385, 4
      %s387 = scalar_lea.vmem %s1, %s386
      %p388 = pneg %p70
      %p389 = pneg %p67
      %p390 = pneg %p91
      %p391 = pneg %p88
      %p392 = pneg %p112
      %p393 = pneg %p109
      %p394 = pneg %p133
      %p395 = pneg %p130
      %p396 = pneg %p154
      %p397 = pneg %p151
      %p398 = pneg %p175
      %p399 = pneg %p172
      %p400 = pneg %p196
      %p401 = pneg %p193
      %p402 = pneg %p217
      %p403 = pneg %p214
      %p404 = pneg %p238
      %p405 = pneg %p235
      %p406 = pneg %p259
      %p407 = pneg %p256
      %p408 = pneg %p280
      %p409 = pneg %p277
      %p410 = pneg %p306
      %p411 = pneg %p303
      %p412 = scmp.lt.s32.totalorder %s23, 1
      %s413 = scalar_select %p412, %s23, 1
      %s414 = smul.addr %s413, 2
      %s415 = smul.addr %s414, 4
      %s416 = scalar_lea.vmem %s12, %s415
      %p417 = scmp.lt.s32.totalorder %s23, 1
      %s418 = scalar_select %p417, %s23, 1
      %s419 = smul.addr %s418, 8
      %s420 = scalar_lea.vmem %s0, %s419
      %p421 = scmp.lt.s32.totalorder %s23, 1
      %s422 = scalar_select %p421, %s23, 1
      %s423 = smul.addr %s422, 2
      %s424 = smul.addr %s423, 4
      %s425 = scalar_lea.vmem %s1, %s424
      %p426 = scmp.lt.s32.totalorder %s23, 1
      %s427 = scalar_select %p426, %s23, 1
      %s428 = smul.addr %s427, 2
      %s429 = smul.addr %s428, 4
      %s430 = scalar_lea.vmem %s12, %s429
      %432 = vst [vmem:[#allocation2] sm:$0xff] 0.0
      %433 = vst [vmem:[#allocation2 + $0x8] sm:$0xff] 0.0
      %vm434 = vcmask 572416
      %435 = vst.msk [vmem:[#allocation2 + $0x10] sm:$0xff] %vm434, 0.0
      %436 = vst [vmem:[#allocation3] sm:$0xff] 0.0
      %vm437 = vcmask 568320
      %438 = vst.msk [vmem:[#allocation3 + $0x8] sm:$0xf] %vm437, 0.0
      %v439 = vld [vmem:[%s425] sm:$0xff]
      %441 = vst [vmem:[#allocation1] ss:$2 sm:$0xff] %v439
      %v442 = vld.sshfl [vmem:[#allocation1] sm:$0xff pattern:$0x75316420]
      %443 = vrot.lane.b32.xlu0 %v442, 19
      %v444 = vpop.permute.xlu0 %443
      %vm446 = vcmask 281752
      %447 = vst.msk [vmem:[#allocation2] sm:$0xf] %vm446, %v444
      %448 = vst [vmem:[#allocation1] ss:$2 sm:$0xff] %v439
      %v449 = vld.sshfl [vmem:[#allocation1] sm:$0xff pattern:$0x75316420]
      %450 = vrot.lane.b32.xlu0 %v449, 21
      %v451 = vpop.permute.xlu0 %450
      %vm453 = vcmask 429352
      %454 = vst.msk [vmem:[#allocation2] sm:$0xf] %vm453, %v451
      %455 = vst [vmem:[#allocation1] ss:$2 sm:$0xff] %v439
      %v456 = vld.sshfl [vmem:[#allocation1] sm:$0xff pattern:$0x75316420]
      %457 = vrot.lane.b32.xlu0 %v456, 23
      %v458 = vpop.permute.xlu0 %457
      %vm460 = vcmask 576952
      %461 = vst.msk [vmem:[#allocation2] sm:$0xf] %vm460, %v458
      %462 = vst [vmem:[#allocation1] ss:$2 sm:$0xff] %v439
      %v463 = vld.sshfl [vmem:[#allocation1] sm:$0xff pattern:$0x75316420]
      %464 = vrot.lane.b32.xlu0 %v463, 25
      %v465 = vpop.permute.xlu0 %464
      %vm467 = vcmask 724552
      %468 = vst.msk [vmem:[#allocation2] sm:$0xf] %vm467, %v465
      %469 = vst [vmem:[#allocation1] ss:$2 sm:$0xff] %v439
      %v470 = vld.sshfl [vmem:[#allocation1] sm:$0xff pattern:$0x75316420]
      %471 = vrot.lane.b32.xlu0 %v470, 27
      %v472 = vpop.permute.xlu0 %471
      %vm474 = vcmask 872152
      %475 = vst.msk [vmem:[#allocation2] sm:$0xf] %vm474, %v472
      %476 = vst [vmem:[#allocation1] ss:$2 sm:$0xff] %v439
      %v477 = vld.sshfl [vmem:[#allocation1] sm:$0xff pattern:$0x75316420]
      %478 = vrot.lane.b32.xlu0 %v477, 29
      %v479 = vpop.permute.xlu0 %478
      %vm481 = vcmask 1019752
      %482 = vst.msk [vmem:[#allocation2] sm:$0xf] %vm481, %v479
      %483 = vst [vmem:[#allocation1] ss:$2 sm:$0xff] %v439
      %v484 = vld.sshfl [vmem:[#allocation1] sm:$0xff pattern:$0x75316420]
      %485 = vrot.lane.b32.xlu0 %v484, 31
      %v486 = vpop.permute.xlu0 %485
      %vm488 = vcmask 1044472
      %489 = vst.msk [vmem:[#allocation2] sm:$0xf] %vm488, %v486
      %vm490 = vcmask 117760
      %491 = vst.msk [vmem:[#allocation2 + $0x8] sm:$0xf] %vm490, %v486
      %492 = vst [vmem:[#allocation1] ss:$2 sm:$0xff] %v439
      %v493 = vld.sshfl [vmem:[#allocation1] sm:$0xff pattern:$0x75316420]
      %494 = vrot.lane.b32.xlu0 %v493, 33
      %v495 = vpop.permute.xlu0 %494
      %vm497 = vcmask 265352
      %498 = vst.msk [vmem:[#allocation2 + $0x8] sm:$0xf] %vm497, %v495
      %499 = vst [vmem:[#allocation1] ss:$2 sm:$0xff] %v439
      %v500 = vld.sshfl [vmem:[#allocation1 + $0x8] sm:$0xff pattern:$0x75316420]
      %501 = vrot.lane.b32.xlu0 %v500, 35
      %v502 = vpop.permute.xlu0 %501
      %vm504 = vcmask 412952
      %505 = vst.msk [vmem:[#allocation2 + $0x8] sm:$0xf] %vm504, %v502
      %506 = vst [vmem:[#allocation1] ss:$2 sm:$0xff] %v439
      %v507 = vld.sshfl [vmem:[#allocation1 + $0x8] sm:$0xff pattern:$0x75316420]
      %508 = vrot.lane.b32.xlu0 %v507, 37
      %v509 = vpop.permute.xlu0 %508
      %vm511 = vcmask 560552
      %512 = vst.msk [vmem:[#allocation2 + $0x8] sm:$0xf] %vm511, %v509
      %513 = vst [vmem:[#allocation1] ss:$2 sm:$0xff] %v439
      %v514 = vld.sshfl [vmem:[#allocation1 + $0x8] sm:$0xff pattern:$0x75316420]
      %515 = vrot.lane.b32.xlu0 %v514, 39
      %v516 = vpop.permute.xlu0 %515
      %vm518 = vcmask 708152
      %519 = vst.msk [vmem:[#allocation2 + $0x8] sm:$0xf] %vm518, %v516
      %520 = vst [vmem:[#allocation1] ss:$2 sm:$0xff] %v439
      %v521 = vld.sshfl [vmem:[#allocation1 + $0x8] sm:$0xff pattern:$0x75316420]
      %522 = vrot.lane.b32.xlu0 %v521, 41
      %v523 = vpop.permute.xlu0 %522
      %vm525 = vcmask 855752
      %526 = vst.msk [vmem:[#allocation2 + $0x8] sm:$0xf] %vm525, %v523
      %527 = vst [vmem:[#allocation1] ss:$2 sm:$0xff] %v439
      %v528 = vld.sshfl [vmem:[#allocation1 + $0x8] sm:$0xff pattern:$0x75316420]
      %529 = vrot.lane.b32.xlu0 %v528, 43
      %v530 = vpop.permute.xlu0 %529
      %vm532 = vcmask 1003352
      %533 = vst.msk [vmem:[#allocation2 + $0x8] sm:$0xf] %vm532, %v530
      %534 = vst [vmem:[#allocation1] ss:$2 sm:$0xff] %v439
      %v535 = vld.sshfl [vmem:[#allocation1 + $0x8] sm:$0xff pattern:$0x75316420]
      %536 = vrot.lane.b32.xlu0 %v535, 45
      %v537 = vpop.permute.xlu0 %536
      %vm539 = vcmask 1044456
      %540 = vst.msk [vmem:[#allocation2 + $0x8] sm:$0xf] %vm539, %v537
      %vm541 = vcmask 101376
      %542 = vst.msk [vmem:[#allocation2 + $0x10] sm:$0xf] %vm541, %v537
      %543 = vst [vmem:[#allocation1] ss:$2 sm:$0xff] %v439
      %v544 = vld.sshfl [vmem:[#allocation1 + $0x8] sm:$0xff pattern:$0x75316420]
      %545 = vrot.lane.b32.xlu0 %v544, 47
      %v546 = vpop.permute.xlu0 %545
      %vm548 = vcmask 248952
      %549 = vst.msk [vmem:[#allocation2 + $0x10] sm:$0xf] %vm548, %v546
      %550 = vst [vmem:[#allocation1] ss:$2 sm:$0xff] %v439
      %v551 = vld.sshfl [vmem:[#allocation1 + $0x8] sm:$0xff pattern:$0x75316420]
      %552 = vrot.lane.b32.xlu0 %v551, 49
      %v553 = vpop.permute.xlu0 %552
      %vm555 = vcmask 396552
      %556 = vst.msk [vmem:[#allocation2 + $0x10] sm:$0xf] %vm555, %v553
      %v557 = vld [vmem:[%s420] sm:$0xff]
      %v558 = vpack.c.bf16 %v557, %v557
      %v559 = vld [vmem:[%s2] sm:$0xf]
      %v560 = vld [vmem:[%s2 + $0x4] sm:$0xf]
      %v561 = vld [vmem:[%s3] sm:$0xff]
      %v562 = vld [vmem:[%s3 + $0x8] sm:$0xff]
      %564 = vset.pattern.permute.xlu0 0
      %565 = vperm.xlu0 %564, %v561
      %v566 = vpop.permute.xlu0 %565
      %569 = vset.pattern.permute.xlu0 0
      %570 = vperm.xlu0 %569, %v562
      %v571 = vpop.permute.xlu0 %570
      %v575 = vunpack.c.l.b16 %v559
      %v576 = vunpack.c.l.b16 %v560
      %v577 = vpack.c.b16 %v576, %v575
      %vm578 = vcmask 64512
      %v580 = vsel %vm578, %v577, 0
      %vm582 = vcmask 1043456
      %v584 = vsel %vm582, %v558, 0
      %586 = vmatpush.bf16.msra.mxu0 0
      %587 = vmatpush.bf16.msra.mxu0 0
      %588 = vmatpush.bf16.msra.mxu0 0
      %589 = vmatpush.bf16.msra.mxu0 0
      %590 = vmatpush.bf16.msra.mxu0 0
      %591 = vmatpush.bf16.msra.mxu0 0
      %592 = vmatpush.bf16.msra.mxu0 0
      %593 = vmatpush.bf16.msra.mxu0 %v584
      %594 = vmatmul.bf16.gmra.mxu0 %v580
      %v595 = vpop.f32.mrf.mxu0
      %v596 = vadd.f32 %v566, %v595
      %v597 = vpop.f32.mrf.mxu0
      %v598 = vadd.f32 %v571, %v597
      %599 = vdwg.mxu0
      %v600 = vld [vmem:[%s4] sm:$0xf]
      %v601 = vld [vmem:[%s4 + $0x4] sm:$0xf]
      %v602 = vpack.c.bf16 %v596, %v596
      %v604 = vrot.slane %v602, 2
      %v606 = vsel %vm578, %v604, 0
      %v609 = vsel %vm582, %v601, 0
      %611 = vmatpush.bf16.msra.mxu0 0
      %612 = vmatpush.bf16.msra.mxu0 0
      %613 = vmatpush.bf16.msra.mxu0 0
      %614 = vmatpush.bf16.msra.mxu0 0
      %615 = vmatpush.bf16.msra.mxu0 0
      %616 = vmatpush.bf16.msra.mxu0 0
      %617 = vmatpush.bf16.msra.mxu0 0
      %618 = vmatpush.bf16.msra.mxu0 %v609
      %619 = vmatmul.bf16.gmra.mxu0 %v606
      %v620 = vpop.f32.mrf.mxu0
      %v621 = vadd.f32 0.0, %v620
      %v622 = vpop.f32.mrf.mxu0
      %623 = vdwg.mxu0
      %v625 = vsel %vm578, %v602, 0
      %v628 = vsel %vm582, %v600, 0
      %630 = vmatpush.bf16.msra.mxu0 0
      %631 = vmatpush.bf16.msra.mxu0 0
      %632 = vmatpush.bf16.msra.mxu0 0
      %633 = vmatpush.bf16.msra.mxu0 0
      %634 = vmatpush.bf16.msra.mxu0 0
      %635 = vmatpush.bf16.msra.mxu0 0
      %636 = vmatpush.bf16.msra.mxu0 0
      %637 = vmatpush.bf16.msra.mxu0 %v628
      %638 = vmatmul.bf16.gmra.mxu0 %v625
      %v639 = vpop.f32.mrf.mxu0
      %v640 = vadd.f32 %v621, %v639
      %v641 = vpop.f32.mrf.mxu0
      %642 = vdwg.mxu0
      %v644 = vrot.slane %v640, 4
      %645 = vrot.lane.b32.xlu0 %v644, 18
      %v646 = vpop.permute.xlu0 %645
      %vm648 = vcmask 294036
      %649 = vst.msk [vmem:[#allocation2] sm:$0xf0] %vm648, %v646
      %650 = vrot.lane.b32.xlu0 %v604, 120
      %v651 = vpop.permute.xlu0 %650
      %v653 = vsel %vm578, %v651, 0
      %655 = vmatpush.bf16.msra.mxu0 0
      %656 = vmatpush.bf16.msra.mxu0 0
      %657 = vmatpush.bf16.msra.mxu0 0
      %658 = vmatpush.bf16.msra.mxu0 0
      %659 = vmatpush.bf16.msra.mxu0 0
      %660 = vmatpush.bf16.msra.mxu0 0
      %661 = vmatpush.bf16.msra.mxu0 0
      %662 = vmatpush.bf16.msra.mxu0 %v609
      %663 = vmatmul.bf16.gmra.mxu0 %v653
      %v664 = vpop.f32.mrf.mxu0
      %v665 = vadd.f32 0.0, %v664
      %v666 = vpop.f32.mrf.mxu0
      %667 = vdwg.mxu0
      %668 = vrot.lane.b32.xlu0 %v602, 120
      %v669 = vpop.permute.xlu0 %668
      %v671 = vsel %vm578, %v669, 0
      %673 = vmatpush.bf16.msra.mxu0 0
      %674 = vmatpush.bf16.msra.mxu0 0
      %675 = vmatpush.bf16.msra.mxu0 0
      %676 = vmatpush.bf16.msra.mxu0 0
      %677 = vmatpush.bf16.msra.mxu0 0
      %678 = vmatpush.bf16.msra.mxu0 0
      %679 = vmatpush.bf16.msra.mxu0 0
      %680 = vmatpush.bf16.msra.mxu0 %v628
      %681 = vmatmul.bf16.gmra.mxu0 %v671
      %v682 = vpop.f32.mrf.mxu0
      %v683 = vadd.f32 %v665, %v682
      %v684 = vpop.f32.mrf.mxu0
      %685 = vdwg.mxu0
      %v687 = vrot.slane %v683, 4
      %688 = vrot.lane.b32.xlu0 %v687, 54
      %v689 = vpop.permute.xlu0 %688
      %vm691 = vcmask 589236
      %692 = vst.msk [vmem:[#allocation2] sm:$0xf0] %vm691, %v689
      %693 = vrot.lane.b32.xlu0 %v604, 112
      %v694 = vpop.permute.xlu0 %693
      %v696 = vsel %vm578, %v694, 0
      %698 = vmatpush.bf16.msra.mxu0 0
      %699 = vmatpush.bf16.msra.mxu0 0
      %700 = vmatpush.bf16.msra.mxu0 0
      %701 = vmatpush.bf16.msra.mxu0 0
      %702 = vmatpush.bf16.msra.mxu0 0
      %703 = vmatpush.bf16.msra.mxu0 0
      %704 = vmatpush.bf16.msra.mxu0 0
      %705 = vmatpush.bf16.msra.mxu0 %v609
      %706 = vmatmul.bf16.gmra.mxu0 %v696
      %v707 = vpop.f32.mrf.mxu0
      %v708 = vadd.f32 0.0, %v707
      %v709 = vpop.f32.mrf.mxu0
      %710 = vdwg.mxu0
      %711 = vrot.lane.b32.xlu0 %v602, 112
      %v712 = vpop.permute.xlu0 %711
      %v714 = vsel %vm578, %v712, 0
      %716 = vmatpush.bf16.msra.mxu0 0
      %717 = vmatpush.bf16.msra.mxu0 0
      %718 = vmatpush.bf16.msra.mxu0 0
      %719 = vmatpush.bf16.msra.mxu0 0
      %720 = vmatpush.bf16.msra.mxu0 0
      %721 = vmatpush.bf16.msra.mxu0 0
      %722 = vmatpush.bf16.msra.mxu0 0
      %723 = vmatpush.bf16.msra.mxu0 %v628
      %724 = vmatmul.bf16.gmra.mxu0 %v714
      %v725 = vpop.f32.mrf.mxu0
      %v726 = vadd.f32 %v708, %v725
      %v727 = vpop.f32.mrf.mxu0
      %728 = vdwg.mxu0
      %v730 = vrot.slane %v726, 4
      %731 = vrot.lane.b32.xlu0 %v730, 90
      %v732 = vpop.permute.xlu0 %731
      %vm734 = vcmask 884436
      %735 = vst.msk [vmem:[#allocation2] sm:$0xf0] %vm734, %v732
      %736 = vrot.lane.b32.xlu0 %v604, 104
      %v737 = vpop.permute.xlu0 %736
      %v739 = vsel %vm578, %v737, 0
      %741 = vmatpush.bf16.msra.mxu0 0
      %742 = vmatpush.bf16.msra.mxu0 0
      %743 = vmatpush.bf16.msra.mxu0 0
      %744 = vmatpush.bf16.msra.mxu0 0
      %745 = vmatpush.bf16.msra.mxu0 0
      %746 = vmatpush.bf16.msra.mxu0 0
      %747 = vmatpush.bf16.msra.mxu0 0
      %748 = vmatpush.bf16.msra.mxu0 %v609
      %749 = vmatmul.bf16.gmra.mxu0 %v739
      %v750 = vpop.f32.mrf.mxu0
      %v751 = vadd.f32 0.0, %v750
      %v752 = vpop.f32.mrf.mxu0
      %753 = vdwg.mxu0
      %754 = vrot.lane.b32.xlu0 %v602, 104
      %v755 = vpop.permute.xlu0 %754
      %v757 = vsel %vm578, %v755, 0
      %759 = vmatpush.bf16.msra.mxu0 0
      %760 = vmatpush.bf16.msra.mxu0 0
      %761 = vmatpush.bf16.msra.mxu0 0
      %762 = vmatpush.bf16.msra.mxu0 0
      %763 = vmatpush.bf16.msra.mxu0 0
      %764 = vmatpush.bf16.msra.mxu0 0
      %765 = vmatpush.bf16.msra.mxu0 0
      %766 = vmatpush.bf16.msra.mxu0 %v628
      %767 = vmatmul.bf16.gmra.mxu0 %v757
      %v768 = vpop.f32.mrf.mxu0
      %v769 = vadd.f32 %v751, %v768
      %v770 = vpop.f32.mrf.mxu0
      %771 = vdwg.mxu0
      %v773 = vrot.slane %v769, 4
      %774 = vrot.lane.b32.xlu0 %v773, 126
      %v775 = vpop.permute.xlu0 %774
      %vm777 = vcmask 1048564
      %778 = vst.msk [vmem:[#allocation2] sm:$0xf0] %vm777, %v775
      %vm779 = vcmask 130052
      %780 = vst.msk [vmem:[#allocation2 + $0x8] sm:$0xf0] %vm779, %v775
      %781 = vrot.lane.b32.xlu0 %v604, 96
      %v782 = vpop.permute.xlu0 %781
      %v784 = vsel %vm578, %v782, 0
      %786 = vmatpush.bf16.msra.mxu0 0
      %787 = vmatpush.bf16.msra.mxu0 0
      %788 = vmatpush.bf16.msra.mxu0 0
      %789 = vmatpush.bf16.msra.mxu0 0
      %790 = vmatpush.bf16.msra.mxu0 0
      %791 = vmatpush.bf16.msra.mxu0 0
      %792 = vmatpush.bf16.msra.mxu0 0
      %793 = vmatpush.bf16.msra.mxu0 %v609
      %794 = vmatmul.bf16.gmra.mxu0 %v784
      %v795 = vpop.f32.mrf.mxu0
      %v796 = vadd.f32 0.0, %v795
      %v797 = vpop.f32.mrf.mxu0
      %798 = vdwg.mxu0
      %799 = vrot.lane.b32.xlu0 %v602, 96
      %v800 = vpop.permute.xlu0 %799
      %v802 = vsel %vm578, %v800, 0
      %804 = vmatpush.bf16.msra.mxu0 0
      %805 = vmatpush.bf16.msra.mxu0 0
      %806 = vmatpush.bf16.msra.mxu0 0
      %807 = vmatpush.bf16.msra.mxu0 0
      %808 = vmatpush.bf16.msra.mxu0 0
      %809 = vmatpush.bf16.msra.mxu0 0
      %810 = vmatpush.bf16.msra.mxu0 0
      %811 = vmatpush.bf16.msra.mxu0 %v628
      %812 = vmatmul.bf16.gmra.mxu0 %v802
      %v813 = vpop.f32.mrf.mxu0
      %v814 = vadd.f32 %v796, %v813
      %v815 = vpop.f32.mrf.mxu0
      %816 = vdwg.mxu0
      %v818 = vrot.slane %v814, 4
      %819 = vrot.lane.b32.xlu0 %v818, 34
      %v820 = vpop.permute.xlu0 %819
      %vm822 = vcmask 425236
      %823 = vst.msk [vmem:[#allocation2 + $0x8] sm:$0xf0] %vm822, %v820
      %824 = vrot.lane.b32.xlu0 %v604, 88
      %v825 = vpop.permute.xlu0 %824
      %v827 = vsel %vm578, %v825, 0
      %829 = vmatpush.bf16.msra.mxu0 0
      %830 = vmatpush.bf16.msra.mxu0 0
      %831 = vmatpush.bf16.msra.mxu0 0
      %832 = vmatpush.bf16.msra.mxu0 0
      %833 = vmatpush.bf16.msra.mxu0 0
      %834 = vmatpush.bf16.msra.mxu0 0
      %835 = vmatpush.bf16.msra.mxu0 0
      %836 = vmatpush.bf16.msra.mxu0 %v609
      %837 = vmatmul.bf16.gmra.mxu0 %v827
      %v838 = vpop.f32.mrf.mxu0
      %v839 = vadd.f32 0.0, %v838
      %v840 = vpop.f32.mrf.mxu0
      %841 = vdwg.mxu0
      %842 = vrot.lane.b32.xlu0 %v602, 88
      %v843 = vpop.permute.xlu0 %842
      %v845 = vsel %vm578, %v843, 0
      %847 = vmatpush.bf16.msra.mxu0 0
      %848 = vmatpush.bf16.msra.mxu0 0
      %849 = vmatpush.bf16.msra.mxu0 0
      %850 = vmatpush.bf16.msra.mxu0 0
      %851 = vmatpush.bf16.msra.mxu0 0
      %852 = vmatpush.bf16.msra.mxu0 0
      %853 = vmatpush.bf16.msra.mxu0 0
      %854 = vmatpush.bf16.msra.mxu0 %v628
      %855 = vmatmul.bf16.gmra.mxu0 %v845
      %v856 = vpop.f32.mrf.mxu0
      %v857 = vadd.f32 %v839, %v856
      %v858 = vpop.f32.mrf.mxu0
      %859 = vdwg.mxu0
      %v861 = vrot.slane %v857, 4
      %862 = vrot.lane.b32.xlu0 %v861, 70
      %v863 = vpop.permute.xlu0 %862
      %vm865 = vcmask 720436
      %866 = vst.msk [vmem:[#allocation2 + $0x8] sm:$0xf0] %vm865, %v863
      %867 = vrot.lane.b32.xlu0 %v604, 80
      %v868 = vpop.permute.xlu0 %867
      %v870 = vsel %vm578, %v868, 0
      %872 = vmatpush.bf16.msra.mxu0 0
      %873 = vmatpush.bf16.msra.mxu0 0
      %874 = vmatpush.bf16.msra.mxu0 0
      %875 = vmatpush.bf16.msra.mxu0 0
      %876 = vmatpush.bf16.msra.mxu0 0
      %877 = vmatpush.bf16.msra.mxu0 0
      %878 = vmatpush.bf16.msra.mxu0 0
      %879 = vmatpush.bf16.msra.mxu0 %v609
      %880 = vmatmul.bf16.gmra.mxu0 %v870
      %v881 = vpop.f32.mrf.mxu0
      %v882 = vadd.f32 0.0, %v881
      %v883 = vpop.f32.mrf.mxu0
      %884 = vdwg.mxu0
      %885 = vrot.lane.b32.xlu0 %v602, 80
      %v886 = vpop.permute.xlu0 %885
      %v888 = vsel %vm578, %v886, 0
      %890 = vmatpush.bf16.msra.mxu0 0
      %891 = vmatpush.bf16.msra.mxu0 0
      %892 = vmatpush.bf16.msra.mxu0 0
      %893 = vmatpush.bf16.msra.mxu0 0
      %894 = vmatpush.bf16.msra.mxu0 0
      %895 = vmatpush.bf16.msra.mxu0 0
      %896 = vmatpush.bf16.msra.mxu0 0
      %897 = vmatpush.bf16.msra.mxu0 %v628
      %898 = vmatmul.bf16.gmra.mxu0 %v888
      %v899 = vpop.f32.mrf.mxu0
      %v900 = vadd.f32 %v882, %v899
      %v901 = vpop.f32.mrf.mxu0
      %902 = vdwg.mxu0
      %v904 = vrot.slane %v900, 4
      %905 = vrot.lane.b32.xlu0 %v904, 106
      %v906 = vpop.permute.xlu0 %905
      %vm908 = vcmask 1015636
      %909 = vst.msk [vmem:[#allocation2 + $0x8] sm:$0xf0] %vm908, %v906
      %910 = vrot.lane.b32.xlu0 %v604, 72
      %v911 = vpop.permute.xlu0 %910
      %v913 = vsel %vm578, %v911, 0
      %915 = vmatpush.bf16.msra.mxu0 0
      %916 = vmatpush.bf16.msra.mxu0 0
      %917 = vmatpush.bf16.msra.mxu0 0
      %918 = vmatpush.bf16.msra.mxu0 0
      %919 = vmatpush.bf16.msra.mxu0 0
      %920 = vmatpush.bf16.msra.mxu0 0
      %921 = vmatpush.bf16.msra.mxu0 0
      %922 = vmatpush.bf16.msra.mxu0 %v609
      %923 = vmatmul.bf16.gmra.mxu0 %v913
      %v924 = vpop.f32.mrf.mxu0
      %v925 = vadd.f32 0.0, %v924
      %v926 = vpop.f32.mrf.mxu0
      %927 = vdwg.mxu0
      %928 = vrot.lane.b32.xlu0 %v602, 72
      %v929 = vpop.permute.xlu0 %928
      %v931 = vsel %vm578, %v929, 0
      %933 = vmatpush.bf16.msra.mxu0 0
      %934 = vmatpush.bf16.msra.mxu0 0
      %935 = vmatpush.bf16.msra.mxu0 0
      %936 = vmatpush.bf16.msra.mxu0 0
      %937 = vmatpush.bf16.msra.mxu0 0
      %938 = vmatpush.bf16.msra.mxu0 0
      %939 = vmatpush.bf16.msra.mxu0 0
      %940 = vmatpush.bf16.msra.mxu0 %v628
      %941 = vmatmul.bf16.gmra.mxu0 %v931
      %v942 = vpop.f32.mrf.mxu0
      %v943 = vadd.f32 %v925, %v942
      %v944 = vpop.f32.mrf.mxu0
      %945 = vdwg.mxu0
      %v947 = vrot.slane %v943, 4
      %948 = vrot.lane.b32.xlu0 %v947, 14
      %v949 = vpop.permute.xlu0 %948
      %vm951 = vcmask 261236
      %952 = vst.msk [vmem:[#allocation2 + $0x10] sm:$0xf0] %vm951, %v949
      %v953 = vpack.c.bf16 %v598, %v598
      %v955 = vrot.slane %v953, 2
      %v957 = vsel %vm578, %v955, 0
      %959 = vmatpush.bf16.msra.mxu0 0
      %960 = vmatpush.bf16.msra.mxu0 0
      %961 = vmatpush.bf16.msra.mxu0 0
      %962 = vmatpush.bf16.msra.mxu0 0
      %963 = vmatpush.bf16.msra.mxu0 0
      %964 = vmatpush.bf16.msra.mxu0 0
      %965 = vmatpush.bf16.msra.mxu0 0
      %966 = vmatpush.bf16.msra.mxu0 %v609
      %967 = vmatmul.bf16.gmra.mxu0 %v957
      %v968 = vpop.f32.mrf.mxu0
      %v969 = vadd.f32 0.0, %v968
      %v970 = vpop.f32.mrf.mxu0
      %971 = vdwg.mxu0
      %v973 = vsel %vm578, %v953, 0
      %975 = vmatpush.bf16.msra.mxu0 0
      %976 = vmatpush.bf16.msra.mxu0 0
      %977 = vmatpush.bf16.msra.mxu0 0
      %978 = vmatpush.bf16.msra.mxu0 0
      %979 = vmatpush.bf16.msra.mxu0 0
      %980 = vmatpush.bf16.msra.mxu0 0
      %981 = vmatpush.bf16.msra.mxu0 0
      %982 = vmatpush.bf16.msra.mxu0 %v628
      %983 = vmatmul.bf16.gmra.mxu0 %v973
      %v984 = vpop.f32.mrf.mxu0
      %v985 = vadd.f32 %v969, %v984
      %v986 = vpop.f32.mrf.mxu0
      %987 = vdwg.mxu0
      %v989 = vrot.slane %v985, 4
      %990 = vrot.lane.b32.xlu0 %v989, 36
      %v991 = vpop.permute.xlu0 %990
      %vm993 = vcmask 441636
      %994 = vst.msk [vmem:[#allocation2] sm:$0xf0] %vm993, %v991
      %995 = vrot.lane.b32.xlu0 %v955, 120
      %v996 = vpop.permute.xlu0 %995
      %v998 = vsel %vm578, %v996, 0
      %1000 = vmatpush.bf16.msra.mxu0 0
      %1001 = vmatpush.bf16.msra.mxu0 0
      %1002 = vmatpush.bf16.msra.mxu0 0
      %1003 = vmatpush.bf16.msra.mxu0 0
      %1004 = vmatpush.bf16.msra.mxu0 0
      %1005 = vmatpush.bf16.msra.mxu0 0
      %1006 = vmatpush.bf16.msra.mxu0 0
      %1007 = vmatpush.bf16.msra.mxu0 %v609
      %1008 = vmatmul.bf16.gmra.mxu0 %v998
      %v1009 = vpop.f32.mrf.mxu0
      %v1010 = vadd.f32 0.0, %v1009
      %v1011 = vpop.f32.mrf.mxu0
      %1012 = vdwg.mxu0
      %1013 = vrot.lane.b32.xlu0 %v953, 120
      %v1014 = vpop.permute.xlu0 %1013
      %v1016 = vsel %vm578, %v1014, 0
      %1018 = vmatpush.bf16.msra.mxu0 0
      %1019 = vmatpush.bf16.msra.mxu0 0
      %1020 = vmatpush.bf16.msra.mxu0 0
      %1021 = vmatpush.bf16.msra.mxu0 0
      %1022 = vmatpush.bf16.msra.mxu0 0
      %1023 = vmatpush.bf16.msra.mxu0 0
      %1024 = vmatpush.bf16.msra.mxu0 0
      %1025 = vmatpush.bf16.msra.mxu0 %v628
      %1026 = vmatmul.bf16.gmra.mxu0 %v1016
      %v1027 = vpop.f32.mrf.mxu0
      %v1028 = vadd.f32 %v1010, %v1027
      %v1029 = vpop.f32.mrf.mxu0
      %1030 = vdwg.mxu0
      %v1032 = vrot.slane %v1028, 4
      %1033 = vrot.lane.b32.xlu0 %v1032, 72
      %v1034 = vpop.permute.xlu0 %1033
      %vm1036 = vcmask 736836
      %1037 = vst.msk [vmem:[#allocation2] sm:$0xf0] %vm1036, %v1034
      %1038 = vrot.lane.b32.xlu0 %v955, 112
      %v1039 = vpop.permute.xlu0 %1038
      %v1041 = vsel %vm578, %v1039, 0
      %1043 = vmatpush.bf16.msra.mxu0 0
      %1044 = vmatpush.bf16.msra.mxu0 0
      %1045 = vmatpush.bf16.msra.mxu0 0
      %1046 = vmatpush.bf16.msra.mxu0 0
      %1047 = vmatpush.bf16.msra.mxu0 0
      %1048 = vmatpush.bf16.msra.mxu0 0
      %1049 = vmatpush.bf16.msra.mxu0 0
      %1050 = vmatpush.bf16.msra.mxu0 %v609
      %1051 = vmatmul.bf16.gmra.mxu0 %v1041
      %v1052 = vpop.f32.mrf.mxu0
      %v1053 = vadd.f32 0.0, %v1052
      %v1054 = vpop.f32.mrf.mxu0
      %1055 = vdwg.mxu0
      %1056 = vrot.lane.b32.xlu0 %v953, 112
      %v1057 = vpop.permute.xlu0 %1056
      %v1059 = vsel %vm578, %v1057, 0
      %1061 = vmatpush.bf16.msra.mxu0 0
      %1062 = vmatpush.bf16.msra.mxu0 0
      %1063 = vmatpush.bf16.msra.mxu0 0
      %1064 = vmatpush.bf16.msra.mxu0 0
      %1065 = vmatpush.bf16.msra.mxu0 0
      %1066 = vmatpush.bf16.msra.mxu0 0
      %1067 = vmatpush.bf16.msra.mxu0 0
      %1068 = vmatpush.bf16.msra.mxu0 %v628
      %1069 = vmatmul.bf16.gmra.mxu0 %v1059
      %v1070 = vpop.f32.mrf.mxu0
      %v1071 = vadd.f32 %v1053, %v1070
      %v1072 = vpop.f32.mrf.mxu0
      %1073 = vdwg.mxu0
      %v1075 = vrot.slane %v1071, 4
      %1076 = vrot.lane.b32.xlu0 %v1075, 108
      %v1077 = vpop.permute.xlu0 %1076
      %vm1079 = vcmask 1032036
      %1080 = vst.msk [vmem:[#allocation2] sm:$0xf0] %vm1079, %v1077
      %1081 = vrot.lane.b32.xlu0 %v955, 104
      %v1082 = vpop.permute.xlu0 %1081
      %v1084 = vsel %vm578, %v1082, 0
      %1086 = vmatpush.bf16.msra.mxu0 0
      %1087 = vmatpush.bf16.msra.mxu0 0
      %1088 = vmatpush.bf16.msra.mxu0 0
      %1089 = vmatpush.bf16.msra.mxu0 0
      %1090 = vmatpush.bf16.msra.mxu0 0
      %1091 = vmatpush.bf16.msra.mxu0 0
      %1092 = vmatpush.bf16.msra.mxu0 0
      %1093 = vmatpush.bf16.msra.mxu0 %v609
      %1094 = vmatmul.bf16.gmra.mxu0 %v1084
      %v1095 = vpop.f32.mrf.mxu0
      %v1096 = vadd.f32 0.0, %v1095
      %v1097 = vpop.f32.mrf.mxu0
      %1098 = vdwg.mxu0
      %1099 = vrot.lane.b32.xlu0 %v953, 104
      %v1100 = vpop.permute.xlu0 %1099
      %v1102 = vsel %vm578, %v1100, 0
      %1104 = vmatpush.bf16.msra.mxu0 0
      %1105 = vmatpush.bf16.msra.mxu0 0
      %1106 = vmatpush.bf16.msra.mxu0 0
      %1107 = vmatpush.bf16.msra.mxu0 0
      %1108 = vmatpush.bf16.msra.mxu0 0
      %1109 = vmatpush.bf16.msra.mxu0 0
      %1110 = vmatpush.bf16.msra.mxu0 0
      %1111 = vmatpush.bf16.msra.mxu0 %v628
      %1112 = vmatmul.bf16.gmra.mxu0 %v1102
      %v1113 = vpop.f32.mrf.mxu0
      %v1114 = vadd.f32 %v1096, %v1113
      %v1115 = vpop.f32.mrf.mxu0
      %1116 = vdwg.mxu0
      %v1118 = vrot.slane %v1114, 4
      %1119 = vrot.lane.b32.xlu0 %v1118, 16
      %v1120 = vpop.permute.xlu0 %1119
      %vm1122 = vcmask 277636
      %1123 = vst.msk [vmem:[#allocation2 + $0x8] sm:$0xf0] %vm1122, %v1120
      %1124 = vrot.lane.b32.xlu0 %v955, 96
      %v1125 = vpop.permute.xlu0 %1124
      %v1127 = vsel %vm578, %v1125, 0
      %1129 = vmatpush.bf16.msra.mxu0 0
      %1130 = vmatpush.bf16.msra.mxu0 0
      %1131 = vmatpush.bf16.msra.mxu0 0
      %1132 = vmatpush.bf16.msra.mxu0 0
      %1133 = vmatpush.bf16.msra.mxu0 0
      %1134 = vmatpush.bf16.msra.mxu0 0
      %1135 = vmatpush.bf16.msra.mxu0 0
      %1136 = vmatpush.bf16.msra.mxu0 %v609
      %1137 = vmatmul.bf16.gmra.mxu0 %v1127
      %v1138 = vpop.f32.mrf.mxu0
      %v1139 = vadd.f32 0.0, %v1138
      %v1140 = vpop.f32.mrf.mxu0
      %1141 = vdwg.mxu0
      %1142 = vrot.lane.b32.xlu0 %v953, 96
      %v1143 = vpop.permute.xlu0 %1142
      %v1145 = vsel %vm578, %v1143, 0
      %1147 = vmatpush.bf16.msra.mxu0 0
      %1148 = vmatpush.bf16.msra.mxu0 0
      %1149 = vmatpush.bf16.msra.mxu0 0
      %1150 = vmatpush.bf16.msra.mxu0 0
      %1151 = vmatpush.bf16.msra.mxu0 0
      %1152 = vmatpush.bf16.msra.mxu0 0
      %1153 = vmatpush.bf16.msra.mxu0 0
      %1154 = vmatpush.bf16.msra.mxu0 %v628
      %1155 = vmatmul.bf16.gmra.mxu0 %v1145
      %v1156 = vpop.f32.mrf.mxu0
      %v1157 = vadd.f32 %v1139, %v1156
      %v1158 = vpop.f32.mrf.mxu0
      %1159 = vdwg.mxu0
      %v1161 = vrot.slane %v1157, 4
      %1162 = vrot.lane.b32.xlu0 %v1161, 52
      %v1163 = vpop.permute.xlu0 %1162
      %vm1165 = vcmask 572836
      %1166 = vst.msk [vmem:[#allocation2 + $0x8] sm:$0xf0] %vm1165, %v1163
      %1167 = vrot.lane.b32.xlu0 %v955, 88
      %v1168 = vpop.permute.xlu0 %1167
      %v1170 = vsel %vm578, %v1168, 0
      %1172 = vmatpush.bf16.msra.mxu0 0
      %1173 = vmatpush.bf16.msra.mxu0 0
      %1174 = vmatpush.bf16.msra.mxu0 0
      %1175 = vmatpush.bf16.msra.mxu0 0
      %1176 = vmatpush.bf16.msra.mxu0 0
      %1177 = vmatpush.bf16.msra.mxu0 0
      %1178 = vmatpush.bf16.msra.mxu0 0
      %1179 = vmatpush.bf16.msra.mxu0 %v609
      %1180 = vmatmul.bf16.gmra.mxu0 %v1170
      %v1181 = vpop.f32.mrf.mxu0
      %v1182 = vadd.f32 0.0, %v1181
      %v1183 = vpop.f32.mrf.mxu0
      %1184 = vdwg.mxu0
      %1185 = vrot.lane.b32.xlu0 %v953, 88
      %v1186 = vpop.permute.xlu0 %1185
      %v1188 = vsel %vm578, %v1186, 0
      %1190 = vmatpush.bf16.msra.mxu0 0
      %1191 = vmatpush.bf16.msra.mxu0 0
      %1192 = vmatpush.bf16.msra.mxu0 0
      %1193 = vmatpush.bf16.msra.mxu0 0
      %1194 = vmatpush.bf16.msra.mxu0 0
      %1195 = vmatpush.bf16.msra.mxu0 0
      %1196 = vmatpush.bf16.msra.mxu0 0
      %1197 = vmatpush.bf16.msra.mxu0 %v628
      %1198 = vmatmul.bf16.gmra.mxu0 %v1188
      %v1199 = vpop.f32.mrf.mxu0
      %v1200 = vadd.f32 %v1182, %v1199
      %v1201 = vpop.f32.mrf.mxu0
      %1202 = vdwg.mxu0
      %v1204 = vrot.slane %v1200, 4
      %1205 = vrot.lane.b32.xlu0 %v1204, 88
      %v1206 = vpop.permute.xlu0 %1205
      %vm1208 = vcmask 868036
      %1209 = vst.msk [vmem:[#allocation2 + $0x8] sm:$0xf0] %vm1208, %v1206
      %1210 = vrot.lane.b32.xlu0 %v955, 80
      %v1211 = vpop.permute.xlu0 %1210
      %v1213 = vsel %vm578, %v1211, 0
      %1215 = vmatpush.bf16.msra.mxu0 0
      %1216 = vmatpush.bf16.msra.mxu0 0
      %1217 = vmatpush.bf16.msra.mxu0 0
      %1218 = vmatpush.bf16.msra.mxu0 0
      %1219 = vmatpush.bf16.msra.mxu0 0
      %1220 = vmatpush.bf16.msra.mxu0 0
      %1221 = vmatpush.bf16.msra.mxu0 0
      %1222 = vmatpush.bf16.msra.mxu0 %v609
      %1223 = vmatmul.bf16.gmra.mxu0 %v1213
      %v1224 = vpop.f32.mrf.mxu0
      %v1225 = vadd.f32 0.0, %v1224
      %v1226 = vpop.f32.mrf.mxu0
      %1227 = vdwg.mxu0
      %1228 = vrot.lane.b32.xlu0 %v953, 80
      %v1229 = vpop.permute.xlu0 %1228
      %v1231 = vsel %vm578, %v1229, 0
      %1233 = vmatpush.bf16.msra.mxu0 0
      %1234 = vmatpush.bf16.msra.mxu0 0
      %1235 = vmatpush.bf16.msra.mxu0 0
      %1236 = vmatpush.bf16.msra.mxu0 0
      %1237 = vmatpush.bf16.msra.mxu0 0
      %1238 = vmatpush.bf16.msra.mxu0 0
      %1239 = vmatpush.bf16.msra.mxu0 0
      %1240 = vmatpush.bf16.msra.mxu0 %v628
      %1241 = vmatmul.bf16.gmra.mxu0 %v1231
      %v1242 = vpop.f32.mrf.mxu0
      %v1243 = vadd.f32 %v1225, %v1242
      %v1244 = vpop.f32.mrf.mxu0
      %1245 = vdwg.mxu0
      %v1247 = vrot.slane %v1243, 4
      %1248 = vrot.lane.b32.xlu0 %v1247, 124
      %v1249 = vpop.permute.xlu0 %1248
      %vm1251 = vcmask 1048548
      %1252 = vst.msk [vmem:[#allocation2 + $0x8] sm:$0xf0] %vm1251, %v1249
      %vm1253 = vcmask 113668
      %1254 = vst.msk [vmem:[#allocation2 + $0x10] sm:$0xf0] %vm1253, %v1249
      %1255 = vrot.lane.b32.xlu0 %v955, 72
      %v1256 = vpop.permute.xlu0 %1255
      %v1258 = vsel %vm578, %v1256, 0
      %1260 = vmatpush.bf16.msra.mxu0 0
      %1261 = vmatpush.bf16.msra.mxu0 0
      %1262 = vmatpush.bf16.msra.mxu0 0
      %1263 = vmatpush.bf16.msra.mxu0 0
      %1264 = vmatpush.bf16.msra.mxu0 0
      %1265 = vmatpush.bf16.msra.mxu0 0
      %1266 = vmatpush.bf16.msra.mxu0 0
      %1267 = vmatpush.bf16.msra.mxu0 %v609
      %1268 = vmatmul.bf16.gmra.mxu0 %v1258
      %v1269 = vpop.f32.mrf.mxu0
      %v1270 = vadd.f32 0.0, %v1269
      %v1271 = vpop.f32.mrf.mxu0
      %1272 = vdwg.mxu0
      %1273 = vrot.lane.b32.xlu0 %v953, 72
      %v1274 = vpop.permute.xlu0 %1273
      %v1276 = vsel %vm578, %v1274, 0
      %1278 = vmatpush.bf16.msra.mxu0 0
      %1279 = vmatpush.bf16.msra.mxu0 0
      %1280 = vmatpush.bf16.msra.mxu0 0
      %1281 = vmatpush.bf16.msra.mxu0 0
      %1282 = vmatpush.bf16.msra.mxu0 0
      %1283 = vmatpush.bf16.msra.mxu0 0
      %1284 = vmatpush.bf16.msra.mxu0 0
      %1285 = vmatpush.bf16.msra.mxu0 %v628
      %1286 = vmatmul.bf16.gmra.mxu0 %v1276
      %v1287 = vpop.f32.mrf.mxu0
      %v1288 = vadd.f32 %v1270, %v1287
      %v1289 = vpop.f32.mrf.mxu0
      %1290 = vdwg.mxu0
      %v1292 = vrot.slane %v1288, 4
      %1293 = vrot.lane.b32.xlu0 %v1292, 32
      %v1294 = vpop.permute.xlu0 %1293
      %vm1296 = vcmask 408836
      %1297 = vst.msk [vmem:[#allocation2 + $0x10] sm:$0xf0] %vm1296, %v1294
      %v1298 = vld [vmem:[#allocation2] sm:$0xff]
      %v1299 = vld [vmem:[#allocation2 + $0x8] sm:$0xff]
      %v1300 = vld [vmem:[#allocation2 + $0x10] sm:$0xff]
      %1304 = vrot.lane.b32.xlu0 %v1298, 127
      %v1305 = vpop.permute.xlu0 %1304
      %1306 = vrot.lane.b32.xlu0 %v1299, 127
      %v1307 = vpop.permute.xlu0 %1306
      %1308 = vrot.lane.b32.xlu0 %v1300, 127
      %v1309 = vpop.permute.xlu0 %1308
      %vm1310 = vcmask 1039360
      %v1311 = vsel %vm1310, %v1305, %v1307
      %v1312 = vsel %vm1310, %v1307, %v1309
      %1316 = vrot.lane.b32.xlu0 %v1298, 126
      %v1317 = vpop.permute.xlu0 %1316
      %1318 = vrot.lane.b32.xlu0 %v1299, 126
      %v1319 = vpop.permute.xlu0 %1318
      %1320 = vrot.lane.b32.xlu0 %v1300, 126
      %v1321 = vpop.permute.xlu0 %1320
      %vm1322 = vcmask 1031168
      %v1323 = vsel %vm1322, %v1317, %v1319
      %v1324 = vsel %vm1322, %v1319, %v1321
      %1328 = vrot.lane.b32.xlu0 %v1298, 110
      %v1329 = vpop.permute.xlu0 %1328
      %1330 = vrot.lane.b32.xlu0 %v1299, 110
      %v1331 = vpop.permute.xlu0 %1330
      %1332 = vrot.lane.b32.xlu0 %v1300, 110
      %v1333 = vpop.permute.xlu0 %1332
      %vm1334 = vcmask 900096
      %v1335 = vsel %vm1334, %v1329, %v1331
      %v1336 = vsel %vm1334, %v1331, %v1333
      %1340 = vrot.lane.b32.xlu0 %v1298, 109
      %v1341 = vpop.permute.xlu0 %1340
      %1342 = vrot.lane.b32.xlu0 %v1299, 109
      %v1343 = vpop.permute.xlu0 %1342
      %1344 = vrot.lane.b32.xlu0 %v1300, 109
      %v1345 = vpop.permute.xlu0 %1344
      %vm1346 = vcmask 891904
      %v1347 = vsel %vm1346, %v1341, %v1343
      %v1348 = vsel %vm1346, %v1343, %v1345
      %1352 = vrot.lane.b32.xlu0 %v1298, 108
      %v1353 = vpop.permute.xlu0 %1352
      %1354 = vrot.lane.b32.xlu0 %v1299, 108
      %v1355 = vpop.permute.xlu0 %1354
      %1356 = vrot.lane.b32.xlu0 %v1300, 108
      %v1357 = vpop.permute.xlu0 %1356
      %vm1358 = vcmask 883712
      %v1359 = vsel %vm1358, %v1353, %v1355
      %v1360 = vsel %vm1358, %v1355, %v1357
      %1364 = vrot.lane.b32.xlu0 %v1298, 92
      %v1365 = vpop.permute.xlu0 %1364
      %1366 = vrot.lane.b32.xlu0 %v1299, 92
      %v1367 = vpop.permute.xlu0 %1366
      %1368 = vrot.lane.b32.xlu0 %v1300, 92
      %v1369 = vpop.permute.xlu0 %1368
      %vm1370 = vcmask 752640
      %v1371 = vsel %vm1370, %v1365, %v1367
      %v1372 = vsel %vm1370, %v1367, %v1369
      %1376 = vrot.lane.b32.xlu0 %v1298, 91
      %v1377 = vpop.permute.xlu0 %1376
      %1378 = vrot.lane.b32.xlu0 %v1299, 91
      %v1379 = vpop.permute.xlu0 %1378
      %1380 = vrot.lane.b32.xlu0 %v1300, 91
      %v1381 = vpop.permute.xlu0 %1380
      %vm1382 = vcmask 744448
      %v1383 = vsel %vm1382, %v1377, %v1379
      %v1384 = vsel %vm1382, %v1379, %v1381
      %1388 = vrot.lane.b32.xlu0 %v1298, 90
      %v1389 = vpop.permute.xlu0 %1388
      %1390 = vrot.lane.b32.xlu0 %v1299, 90
      %v1391 = vpop.permute.xlu0 %1390
      %1392 = vrot.lane.b32.xlu0 %v1300, 90
      %v1393 = vpop.permute.xlu0 %1392
      %vm1394 = vcmask 736256
      %v1395 = vsel %vm1394, %v1389, %v1391
      %v1396 = vsel %vm1394, %v1391, %v1393
      %v1400 = vpack.c.bf16 %v1311, %v1298
      %v1401 = vpack.c.bf16 %v1312, %v1299
      %v1402 = vpack.c.bf16 %v1309, %v1300
      %v1403 = vpack.c.bf16 %v1335, %v1323
      %v1404 = vpack.c.bf16 %v1336, %v1324
      %v1405 = vpack.c.bf16 %v1333, %v1321
      %v1406 = vpack.c.bf16 %v1359, %v1347
      %v1407 = vpack.c.bf16 %v1360, %v1348
      %v1408 = vpack.c.bf16 %v1357, %v1345
      %v1409 = vpack.c.bf16 %v1383, %v1371
      %v1410 = vpack.c.bf16 %v1384, %v1372
      %v1411 = vpack.c.bf16 %v1381, %v1369
      %v1412 = vpack.c.bf16 %v1395, %v1395
      %v1413 = vpack.c.bf16 %v1396, %v1396
      %v1414 = vpack.c.bf16 %v1393, %v1393
      %v1415 = vld [vmem:[%s5] sm:$0x3]
      %vm1416 = vcmask 588800
      %v1418 = vsel %vm1416, %v1415, 0
      %v1421 = vsel %vm582, %v1412, 0
      %v1424 = vsel %vm582, %v1413, 0
      %v1427 = vsel %vm582, %v1414, 0
      %1429 = vmatpush.bf16.msra.mxu0 0
      %1430 = vmatpush.bf16.msra.mxu0 0
      %1431 = vmatpush.bf16.msra.mxu0 0
      %1432 = vmatpush.bf16.msra.mxu0 %v1421
      %1433 = vmatpush.bf16.msra.mxu0 %v1409
      %1434 = vmatpush.bf16.msra.mxu0 %v1406
      %1435 = vmatpush.bf16.msra.mxu0 %v1403
      %1436 = vmatpush.bf16.msra.mxu0 %v1400
      %1437 = vmatmul.bf16.gmra.mxu0 %v1418
      %v1438 = vpop.f32.mrf.mxu0
      %v1439 = vadd.f32 0.0, %v1438
      %v1440 = vpop.f32.mrf.mxu0
      %1441 = vdwg.mxu0
      %1442 = vmatpush.bf16.msra.mxu0 0
      %1443 = vmatpush.bf16.msra.mxu0 0
      %1444 = vmatpush.bf16.msra.mxu0 0
      %1445 = vmatpush.bf16.msra.mxu0 %v1424
      %1446 = vmatpush.bf16.msra.mxu0 %v1410
      %1447 = vmatpush.bf16.msra.mxu0 %v1407
      %1448 = vmatpush.bf16.msra.mxu0 %v1404
      %1449 = vmatpush.bf16.msra.mxu0 %v1401
      %1450 = vmatmul.bf16.gmra.mxu0 %v1418
      %v1451 = vpop.f32.mrf.mxu0
      %v1452 = vadd.f32 0.0, %v1451
      %v1453 = vpop.f32.mrf.mxu0
      %1454 = vdwg.mxu0
      %1455 = vmatpush.bf16.msra.mxu0 0
      %1456 = vmatpush.bf16.msra.mxu0 0
      %1457 = vmatpush.bf16.msra.mxu0 0
      %1458 = vmatpush.bf16.msra.mxu0 %v1427
      %1459 = vmatpush.bf16.msra.mxu0 %v1411
      %1460 = vmatpush.bf16.msra.mxu0 %v1408
      %1461 = vmatpush.bf16.msra.mxu0 %v1405
      %1462 = vmatpush.bf16.msra.mxu0 %v1402
      %1463 = vmatmul.bf16.gmra.mxu0 %v1418
      %v1464 = vpop.f32.mrf.mxu0
      %v1465 = vadd.f32 0.0, %v1464
      %v1466 = vpop.f32.mrf.mxu0
      %1467 = vdwg.mxu0
      %v1468 = vld [vmem:[%s6] sm:$0xf]
      %1470 = vset.pattern.permute.xlu0 0
      %1471 = vperm.xlu0 %1470, %v1468
      %v1472 = vpop.permute.xlu0 %1471
      %v1474 = vmul.f32 %v1439, %v1472
      %v1475 = vmul.f32 %v1452, %v1472
      %v1476 = vmul.f32 %v1465, %v1472
      %v1477 = vld [vmem:[%s7] sm:$0xf]
      %1479 = vset.pattern.permute.xlu0 0
      %1480 = vperm.xlu0 %1479, %v1477
      %v1481 = vpop.permute.xlu0 %1480
      %v1483 = vadd.f32 %v1474, %v1481
      %v1484 = vadd.f32 %v1475, %v1481
      %v1485 = vadd.f32 %v1476, %v1481
      %v1486 = vmax.f32 %v1483, 0.0
      %v1487 = vmax.f32 %v1484, 0.0
      %v1488 = vmax.f32 %v1485, 0.0
      %v1489 = vld [vmem:[%s8] sm:$0x7]
      %v1491 = vperm.slane %v1489, 0
      %v1492 = vperm.slane %v1489, 1
      %v1493 = vperm.slane %v1489, 2
      %v1497 = vmul.f32 %v1486, %v1491
      %v1498 = vmul.f32 %v1487, %v1492
      %v1499 = vmul.f32 %v1488, %v1493
      %v1503 = vrot.slane %v1498, 4
      %v1504 = vsel %vm582, %v1497, %v1503
      %1505 = vrot.lane.b32.xlu0 %v1504, 19
      %v1506 = vpop.permute.xlu0 %1505
      %1507 = vrot.lane.b32.xlu0 %v1499, 19
      %v1508 = vpop.permute.xlu0 %1507
      %v1509 = vrot.slane %v1506, 4
      %vm1510 = vcmask 154624
      %v1511 = vsel %vm1510, %v1509, %v1506
      %v1512 = vsel %vm1510, %v1509, %v1508
      %vm1515 = vcmask 1043608
      %vm1516 = vcmask 1047556
      %vm1517 = vmor %vm1516, %vm1515
      %1518 = vst.msk [vmem:[#allocation3] sm:$0xff] %vm1517, %v1511
      %vm1519 = vcmask 412672
      %1520 = vst.msk [vmem:[#allocation3 + $0x8] sm:$0xf] %vm1519, %v1512
      %v1521 = vld [vmem:[#allocation3] sm:$0xff]
      %v1522 = vld [vmem:[#allocation3 + $0x8] sm:$0xf]
      %1525 = vst [vmem:[#allocation1] ss:$2 sm:$0xff] %v1521
      %s1526 = scalar_lea.vmem [#allocation1], 16
      %1527 = vst [vmem:[%s1526] ss:$2 sm:$0xff] %v1522
      %v1528 = vld.sshfl [vmem:[#allocation1] sm:$0xff pattern:$0x75316420]
      %v1529 = vld.sshfl [vmem:[#allocation1 + $0x8] sm:$0xff pattern:$0x75316420]
      %v1530 = vld.sshfl [vmem:[#allocation1 + $0x10] sm:$0xff pattern:$0x75316420]
      %s1534 = scalar_lea.vmem [#allocation1], 1
      %1535 = vst [vmem:[%s1534] ss:$2 sm:$0xff] %v1521
      %s1536 = scalar_lea.vmem [#allocation1], 17
      %1537 = vst [vmem:[%s1536] ss:$2 sm:$0xff] %v1522
      %v1538 = vld.sshfl [vmem:[#allocation1] sm:$0xff pattern:$0x75316420]
      %v1539 = vld.sshfl [vmem:[#allocation1 + $0x8] sm:$0xff pattern:$0x75316420]
      %v1540 = vld.sshfl [vmem:[#allocation1 + $0x10] sm:$0xff pattern:$0x75316420]
      %1541 = vrot.lane.b32.xlu0 %v1538, 127
      %v1542 = vpop.permute.xlu0 %1541
      %1543 = vrot.lane.b32.xlu0 %v1539, 127
      %v1544 = vpop.permute.xlu0 %1543
      %1545 = vrot.lane.b32.xlu0 %v1540, 127
      %v1546 = vpop.permute.xlu0 %1545
      %v1547 = vsel %vm1310, %v1542, %v1544
      %v1548 = vsel %vm1310, %v1544, %v1546
      %1552 = vst [vmem:[#allocation1] ss:$2 sm:$0xff] %v1521
      %s1553 = scalar_lea.vmem [#allocation1], 16
      %1554 = vst [vmem:[%s1553] ss:$2 sm:$0xff] %v1522
      %v1555 = vld.sshfl [vmem:[#allocation1] sm:$0xff pattern:$0x75316420]
      %v1556 = vld.sshfl [vmem:[#allocation1 + $0x8] sm:$0xff pattern:$0x75316420]
      %v1557 = vld.sshfl [vmem:[#allocation1 + $0x10] sm:$0xff pattern:$0x75316420]
      %1558 = vrot.lane.b32.xlu0 %v1555, 126
      %v1559 = vpop.permute.xlu0 %1558
      %1560 = vrot.lane.b32.xlu0 %v1556, 126
      %v1561 = vpop.permute.xlu0 %1560
      %1562 = vrot.lane.b32.xlu0 %v1557, 126
      %v1563 = vpop.permute.xlu0 %1562
      %v1564 = vsel %vm1322, %v1559, %v1561
      %v1565 = vsel %vm1322, %v1561, %v1563
      %s1569 = scalar_lea.vmem [#allocation1], 1
      %1570 = vst [vmem:[%s1569] ss:$2 sm:$0xff] %v1521
      %s1571 = scalar_lea.vmem [#allocation1], 17
      %1572 = vst [vmem:[%s1571] ss:$2 sm:$0xff] %v1522
      %v1573 = vld.sshfl [vmem:[#allocation1] sm:$0xff pattern:$0x75316420]
      %v1574 = vld.sshfl [vmem:[#allocation1 + $0x8] sm:$0xff pattern:$0x75316420]
      %v1575 = vld.sshfl [vmem:[#allocation1 + $0x10] sm:$0xff pattern:$0x75316420]
      %1576 = vrot.lane.b32.xlu0 %v1573, 110
      %v1577 = vpop.permute.xlu0 %1576
      %1578 = vrot.lane.b32.xlu0 %v1574, 110
      %v1579 = vpop.permute.xlu0 %1578
      %1580 = vrot.lane.b32.xlu0 %v1575, 110
      %v1581 = vpop.permute.xlu0 %1580
      %v1582 = vsel %vm1334, %v1577, %v1579
      %v1583 = vsel %vm1334, %v1579, %v1581
      %1587 = vst [vmem:[#allocation1] ss:$2 sm:$0xff] %v1521
      %s1588 = scalar_lea.vmem [#allocation1], 16
      %1589 = vst [vmem:[%s1588] ss:$2 sm:$0xff] %v1522
      %v1590 = vld.sshfl [vmem:[#allocation1] sm:$0xff pattern:$0x75316420]
      %v1591 = vld.sshfl [vmem:[#allocation1 + $0x8] sm:$0xff pattern:$0x75316420]
      %v1592 = vld.sshfl [vmem:[#allocation1 + $0x10] sm:$0xff pattern:$0x75316420]
      %1593 = vrot.lane.b32.xlu0 %v1590, 109
      %v1594 = vpop.permute.xlu0 %1593
      %1595 = vrot.lane.b32.xlu0 %v1591, 109
      %v1596 = vpop.permute.xlu0 %1595
      %1597 = vrot.lane.b32.xlu0 %v1592, 109
      %v1598 = vpop.permute.xlu0 %1597
      %v1599 = vsel %vm1346, %v1594, %v1596
      %v1600 = vsel %vm1346, %v1596, %v1598
      %s1604 = scalar_lea.vmem [#allocation1], 1
      %1605 = vst [vmem:[%s1604] ss:$2 sm:$0xff] %v1521
      %s1606 = scalar_lea.vmem [#allocation1], 17
      %1607 = vst [vmem:[%s1606] ss:$2 sm:$0xff] %v1522
      %v1608 = vld.sshfl [vmem:[#allocation1] sm:$0xff pattern:$0x75316420]
      %v1609 = vld.sshfl [vmem:[#allocation1 + $0x8] sm:$0xff pattern:$0x75316420]
      %v1610 = vld.sshfl [vmem:[#allocation1 + $0x10] sm:$0xff pattern:$0x75316420]
      %1611 = vrot.lane.b32.xlu0 %v1608, 108
      %v1612 = vpop.permute.xlu0 %1611
      %1613 = vrot.lane.b32.xlu0 %v1609, 108
      %v1614 = vpop.permute.xlu0 %1613
      %1615 = vrot.lane.b32.xlu0 %v1610, 108
      %v1616 = vpop.permute.xlu0 %1615
      %v1617 = vsel %vm1358, %v1612, %v1614
      %v1618 = vsel %vm1358, %v1614, %v1616
      %1622 = vst [vmem:[#allocation1] ss:$2 sm:$0xff] %v1521
      %s1623 = scalar_lea.vmem [#allocation1], 16
      %1624 = vst [vmem:[%s1623] ss:$2 sm:$0xff] %v1522
      %v1625 = vld.sshfl [vmem:[#allocation1] sm:$0xff pattern:$0x75316420]
      %v1626 = vld.sshfl [vmem:[#allocation1 + $0x8] sm:$0xff pattern:$0x75316420]
      %v1627 = vld.sshfl [vmem:[#allocation1 + $0x10] sm:$0xff pattern:$0x75316420]
      %1628 = vrot.lane.b32.xlu0 %v1625, 92
      %v1629 = vpop.permute.xlu0 %1628
      %1630 = vrot.lane.b32.xlu0 %v1626, 92
      %v1631 = vpop.permute.xlu0 %1630
      %1632 = vrot.lane.b32.xlu0 %v1627, 92
      %v1633 = vpop.permute.xlu0 %1632
      %v1634 = vsel %vm1370, %v1629, %v1631
      %v1635 = vsel %vm1370, %v1631, %v1633
      %s1639 = scalar_lea.vmem [#allocation1], 1
      %1640 = vst [vmem:[%s1639] ss:$2 sm:$0xff] %v1521
      %s1641 = scalar_lea.vmem [#allocation1], 17
      %1642 = vst [vmem:[%s1641] ss:$2 sm:$0xff] %v1522
      %v1643 = vld.sshfl [vmem:[#allocation1] sm:$0xff pattern:$0x75316420]
      %v1644 = vld.sshfl [vmem:[#allocation1 + $0x8] sm:$0xff pattern:$0x75316420]
      %v1645 = vld.sshfl [vmem:[#allocation1 + $0x10] sm:$0xff pattern:$0x75316420]
      %1646 = vrot.lane.b32.xlu0 %v1643, 91
      %v1647 = vpop.permute.xlu0 %1646
      %1648 = vrot.lane.b32.xlu0 %v1644, 91
      %v1649 = vpop.permute.xlu0 %1648
      %1650 = vrot.lane.b32.xlu0 %v1645, 91
      %v1651 = vpop.permute.xlu0 %1650
      %v1652 = vsel %vm1382, %v1647, %v1649
      %v1653 = vsel %vm1382, %v1649, %v1651
      %1657 = vst [vmem:[#allocation1] ss:$2 sm:$0xff] %v1521
      %s1658 = scalar_lea.vmem [#allocation1], 16
      %1659 = vst [vmem:[%s1658] ss:$2 sm:$0xff] %v1522
      %v1660 = vld.sshfl [vmem:[#allocation1] sm:$0xff pattern:$0x75316420]
      %v1661 = vld.sshfl [vmem:[#allocation1 + $0x8] sm:$0xff pattern:$0x75316420]
      %v1662 = vld.sshfl [vmem:[#allocation1 + $0x10] sm:$0xff pattern:$0x75316420]
      %1663 = vrot.lane.b32.xlu0 %v1660, 90
      %v1664 = vpop.permute.xlu0 %1663
      %1665 = vrot.lane.b32.xlu0 %v1661, 90
      %v1666 = vpop.permute.xlu0 %1665
      %1667 = vrot.lane.b32.xlu0 %v1662, 90
      %v1668 = vpop.permute.xlu0 %1667
      %v1669 = vsel %vm1394, %v1664, %v1666
      %v1670 = vsel %vm1394, %v1666, %v1668
      %v1674 = vsel %vm582, %v1528, %v1547
      %v1675 = vsel %vm582, %v1529, %v1548
      %v1676 = vsel %vm582, %v1530, %v1546
      %v1677 = vsel %vm582, %v1564, %v1582
      %v1678 = vsel %vm582, %v1565, %v1583
      %v1679 = vsel %vm582, %v1563, %v1581
      %v1680 = vsel %vm582, %v1599, %v1617
      %v1681 = vsel %vm582, %v1600, %v1618
      %v1682 = vsel %vm582, %v1598, %v1616
      %v1683 = vsel %vm582, %v1634, %v1652
      %v1684 = vsel %vm582, %v1635, %v1653
      %v1685 = vsel %vm582, %v1633, %v1651
      %v1686 = vpack.c.bf16 %v1677, %v1674
      %v1687 = vpack.c.bf16 %v1678, %v1675
      %v1688 = vpack.c.bf16 %v1679, %v1676
      %v1689 = vpack.c.bf16 %v1683, %v1680
      %v1690 = vpack.c.bf16 %v1684, %v1681
      %v1691 = vpack.c.bf16 %v1685, %v1682
      %v1692 = vpack.c.bf16 %v1669, %v1669
      %v1693 = vpack.c.bf16 %v1670, %v1670
      %v1694 = vpack.c.bf16 %v1668, %v1668
      %v1695 = vld [vmem:[%s9] sm:$0x3]
      %vm1696 = vcmask 293888
      %v1698 = vsel %vm1696, %v1695, 0
      %vm1700 = vcmask 1041408
      %v1702 = vsel %vm1700, %v1692, 0
      %v1705 = vsel %vm1700, %v1693, 0
      %v1708 = vsel %vm1700, %v1694, 0
      %1710 = vmatpush.bf16.msra.mxu0 0
      %1711 = vmatpush.bf16.msra.mxu0 0
      %1712 = vmatpush.bf16.msra.mxu0 0
      %1713 = vmatpush.bf16.msra.mxu0 0
      %1714 = vmatpush.bf16.msra.mxu0 0
      %1715 = vmatpush.bf16.msra.mxu0 %v1702
      %1716 = vmatpush.bf16.msra.mxu0 %v1689
      %1717 = vmatpush.bf16.msra.mxu0 %v1686
      %1718 = vmatmul.bf16.gmra.mxu0 %v1698
      %v1719 = vpop.f32.mrf.mxu0
      %v1720 = vadd.f32 0.0, %v1719
      %v1721 = vpop.f32.mrf.mxu0
      %1722 = vdwg.mxu0
      %1723 = vmatpush.bf16.msra.mxu0 0
      %1724 = vmatpush.bf16.msra.mxu0 0
      %1725 = vmatpush.bf16.msra.mxu0 0
      %1726 = vmatpush.bf16.msra.mxu0 0
      %1727 = vmatpush.bf16.msra.mxu0 0
      %1728 = vmatpush.bf16.msra.mxu0 %v1705
      %1729 = vmatpush.bf16.msra.mxu0 %v1690
      %1730 = vmatpush.bf16.msra.mxu0 %v1687
      %1731 = vmatmul.bf16.gmra.mxu0 %v1698
      %v1732 = vpop.f32.mrf.mxu0
      %v1733 = vadd.f32 0.0, %v1732
      %v1734 = vpop.f32.mrf.mxu0
      %1735 = vdwg.mxu0
      %1736 = vmatpush.bf16.msra.mxu0 0
      %1737 = vmatpush.bf16.msra.mxu0 0
      %1738 = vmatpush.bf16.msra.mxu0 0
      %1739 = vmatpush.bf16.msra.mxu0 0
      %1740 = vmatpush.bf16.msra.mxu0 0
      %1741 = vmatpush.bf16.msra.mxu0 %v1708
      %1742 = vmatpush.bf16.msra.mxu0 %v1691
      %1743 = vmatpush.bf16.msra.mxu0 %v1688
      %1744 = vmatmul.bf16.gmra.mxu0 %v1698
      %v1745 = vpop.f32.mrf.mxu0
      %v1746 = vadd.f32 0.0, %v1745
      %v1747 = vpop.f32.mrf.mxu0
      %1748 = vdwg.mxu0
      %v1749 = vld [vmem:[%s10] sm:$0xf]
      %1751 = vset.pattern.permute.xlu0 0
      %1752 = vperm.xlu0 %1751, %v1749
      %v1753 = vpop.permute.xlu0 %1752
      %v1755 = vmul.f32 %v1720, %v1753
      %v1756 = vmul.f32 %v1733, %v1753
      %v1757 = vmul.f32 %v1746, %v1753
      %v1758 = vld [vmem:[%s11] sm:$0xf]
      %1760 = vset.pattern.permute.xlu0 0
      %1761 = vperm.xlu0 %1760, %v1758
      %v1762 = vpop.permute.xlu0 %1761
      %v1764 = vadd.f32 %v1755, %v1762
      %v1765 = vadd.f32 %v1756, %v1762
      %v1766 = vadd.f32 %v1757, %v1762
      %v1767 = vmax.f32 %v1764, 0.0
      %v1768 = vmax.f32 %v1765, 0.0
      %v1769 = vmax.f32 %v1766, 0.0
      %1771 = vrot.lane.b32.xlu0 %v1767, 126
      %v1772 = vpop.permute.xlu0 %1771
      %1774 = vrot.lane.b32.xlu0 %v1767, 124
      %v1775 = vpop.permute.xlu0 %1774
      %1777 = vrot.lane.b32.xlu0 %v1767, 122
      %v1778 = vpop.permute.xlu0 %1777
      %1780 = vrot.lane.b32.xlu0 %v1767, 120
      %v1781 = vpop.permute.xlu0 %1780
      %1783 = vrot.lane.b32.xlu0 %v1767, 118
      %v1784 = vpop.permute.xlu0 %1783
      %1786 = vrot.lane.b32.xlu0 %v1767, 116
      %v1787 = vpop.permute.xlu0 %1786
      %1790 = vrot.lane.b32.xlu0 %v1767, 114
      %v1791 = vpop.permute.xlu0 %1790
      %1792 = vrot.lane.b32.xlu0 %v1768, 114
      %v1793 = vpop.permute.xlu0 %1792
      %vm1794 = vcmask 932864
      %v1795 = vsel %vm1794, %v1791, %v1793
      %1797 = vrot.lane.b32.xlu0 %v1768, 112
      %v1798 = vpop.permute.xlu0 %1797
      %1800 = vrot.lane.b32.xlu0 %v1768, 110
      %v1801 = vpop.permute.xlu0 %1800
      %1803 = vrot.lane.b32.xlu0 %v1768, 108
      %v1804 = vpop.permute.xlu0 %1803
      %1806 = vrot.lane.b32.xlu0 %v1768, 106
      %v1807 = vpop.permute.xlu0 %1806
      %1809 = vrot.lane.b32.xlu0 %v1768, 104
      %v1810 = vpop.permute.xlu0 %1809
      %1812 = vrot.lane.b32.xlu0 %v1768, 102
      %v1813 = vpop.permute.xlu0 %1812
      %1816 = vrot.lane.b32.xlu0 %v1768, 100
      %v1817 = vpop.permute.xlu0 %1816
      %1818 = vrot.lane.b32.xlu0 %v1769, 100
      %v1819 = vpop.permute.xlu0 %1818
      %vm1820 = vcmask 818176
      %v1821 = vsel %vm1820, %v1817, %v1819
      %1823 = vrot.lane.b32.xlu0 %v1769, 98
      %v1824 = vpop.permute.xlu0 %1823
      %vm1826 = vcmask 130048
      %v1827 = vsel %vm1826, %v1767, %v1772
      %vm1828 = vcmask 261120
      %v1829 = vsel %vm1828, %v1827, %v1775
      %vm1830 = vcmask 392192
      %v1831 = vsel %vm1830, %v1829, %v1778
      %vm1832 = vcmask 523264
      %v1833 = vsel %vm1832, %v1831, %v1781
      %vm1834 = vcmask 654336
      %v1835 = vsel %vm1834, %v1833, %v1784
      %vm1836 = vcmask 785408
      %v1837 = vsel %vm1836, %v1835, %v1787
      %vm1838 = vcmask 916480
      %v1839 = vsel %vm1838, %v1837, %v1795
      %v1840 = vsel %vm1826, %v1798, %v1801
      %v1841 = vsel %vm1828, %v1840, %v1804
      %v1842 = vsel %vm1830, %v1841, %v1807
      %v1843 = vsel %vm1832, %v1842, %v1810
      %v1844 = vsel %vm1834, %v1843, %v1813
      %v1845 = vsel %vm1836, %v1844, %v1821
      %v1846 = vsel %vm1838, %v1845, %v1824
      %v1849 = vrot.slane %v1846, 4
      %v1850 = vsel %vm582, %v1839, %v1849
      %1852 = vst [vmem:[%s430] sm:$0xff] %v1850
      %p1853 = scmp.lt.s32.totalorder %s23, 1
      %s1854 = scalar_select %p1853, %s23, 1
      %s1855 = smul.addr %s1854, 2
      %s1856 = smul.addr %s1855, 4
      %s1857 = scalar_lea.vmem %s12, %s1856
      // Predicated region
      $region69: #{up_forward.1} parent=67 // pred_check
        %p1858 = pneg %p303
      $region70: #{up_forward.1} parent=67 // pred_check_branch
        %1860 = sbr.rel (%p1858) target = $region72
      $region71: #{up_forward.1} parent=67 // pred_region
        _
      $region72: #{up_forward.1} parent=67 // pred_fallthru
        _
    $region68: #{up_forward.1} parent=5 // pred_fallthru
      _
    %p1861 = scmp.le.s32.totalorder 2, %s18
    // Predicated region
    $region73: #{up_forward.1} parent=5 // pred_check
      %p1862 = pneg %p1861
    $region74: #{up_forward.1} parent=5 // pred_check_branch
      %1864 = sbr.rel (%p1862) target = $region76
    $region75: #{up_forward.1} parent=5 // pred_region
      %s1865 = ssub.s32 %s18, 2
      // Predicated region
      $region77: #{up_forward.1} parent=75 // pred_check
        %p1866 = pneg %p309
      $region78: #{up_forward.1} parent=75 // pred_check_branch
        %1868 = sbr.rel (%p1866) target = $region80
      $region79: #{up_forward.1} parent=75 // pred_region
        %p1869 = scmp.lt.s32.totalorder %s24, 1
        %s1870 = scalar_select %p1869, %s24, 1
        %s1871 = smul.addr %s1870, 2
        %s1872 = smul.addr %s1871, 4
        %s1873 = scalar_lea.vmem %s12, %s1872
      $region80: #{up_forward.1} parent=75 // pred_fallthru
        _
    $region76: #{up_forward.1} parent=5 // pred_fallthru
      _
  $region6: #{up_forward.1} parent=0 // loop_footer
    %s22 = sadd.s32 1, %s18
  $region7: #{up_forward.1} parent=0 // loop_footer_branch
    %17 = sbr.rel target = $region3
  $region8: #{up_forward.1} parent=0 // loop_exit
    _

</llo_original>
